<compile_context>
chip_gen: v6e
topology: v6e:2x2x1
jax: 0.10.0
libtpu: 0.0.40
codegen_flags: <defaults>
</compile_context>

<pallas_src>
import functools

import jax
import jax.numpy as jnp
from jax.experimental import pallas as pl
from jax.experimental.pallas import tpu as pltpu


# ------------------------------ fused kernel -------------------------------- #

def _fused_bottleneck_kernel(x_ref, w1_ref, s1_ref, b1_ref,
                             w2_ref, s2_ref, b2_ref,
                             w3_ref, s3_ref, b3_ref, mask_ref,
                             o_ref, col_ref, *, D, H, W, Cmid):
    """One batch element per grid step; all intermediates stay in VMEM/vregs."""
    P = D * H * W
    x = x_ref[0]                                              # (Cin, P) lane-dense

    # ---- conv1 (1x1x1) + BN1 + ReLU :  (Cmid,Cin) @ (Cin,P) on the MXU ----
    h1 = jnp.dot(w1_ref[...], x, preferred_element_type=jnp.float32)
    h1 = jnp.maximum(h1 * s1_ref[...] + b1_ref[...], 0.0)     # (Cmid, P)

    # ---- conv2 (3x3x3, grouped, pad=1): im2col over the flattened lane axis.
    # For tap (kd,kh,kw) the needed neighbour is at flattened index p + off;
    # a cyclic lane shift gives it everywhere, and the precomputed boundary
    # mask zeroes the positions where the true neighbour is out of range.
    h1d = jnp.concatenate([h1, h1], axis=1)                   # (Cmid, 2P), aligned concat
    for t in range(27):                                       # static unroll
        kd, kh, kw = t // 9, (t // 3) % 3, t % 3
        off = (kd - 1) * H * W + (kh - 1) * W + (kw - 1)
        s = off % P
        shifted = h1 if s == 0 else h1d[:, s:s + P]           # static lane slice
        m = mask_ref[pl.ds(t, 1), :]                          # (1, P) boundary mask
        col_ref[pl.ds(t * Cmid, Cmid), :] = shifted * m       # 8-row aligned, full-lane store

    # ---- conv2 matmul (K = 27*Cmid) + BN2 + ReLU ----
    # w2_ref is the grouped weight expanded block-diagonally to (Cmid, 27*Cmid).
    h2 = jnp.dot(w2_ref[...], col_ref[...], preferred_element_type=jnp.float32)
    h2 = jnp.maximum(h2 * s2_ref[...] + b2_ref[...], 0.0)     # (Cmid, P)

    # ---- conv3 (1x1x1) + BN3 + identity residual + ReLU ----
    out = jnp.dot(w3_ref[...], h2, preferred_element_type=jnp.float32)  # (Cout, P)
    out = out * s3_ref[...] + b3_ref[...] + x                  # Cout == Cin
    o_ref[0] = jnp.maximum(out, 0.0).astype(o_ref.dtype)       # lane-dense store


# ----------------------------- pallas_call wrapper --------------------------- #

def _conv2_boundary_masks(D, H, W):
    """(27, D*H*W) 0/1 masks: tap (kd,kh,kw) valid at position (d,h,w)."""
    d = jnp.arange(D)[:, None, None]
    h = jnp.arange(H)[None, :, None]
    w = jnp.arange(W)[None, None, :]
    rows = []
    for t in range(27):
        kd, kh, kw = t // 9, (t // 3) % 3, t % 3
        dd, dh, dw = kd - 1, kh - 1, kw - 1
        ok = ((d + dd >= 0) & (d + dd < D) &
              (h + dh >= 0) & (h + dh < H) &
              (w + dw >= 0) & (w + dw < W))
        rows.append(ok.reshape(-1))
    return jnp.stack(rows).astype(jnp.float32)


def resnext_bottleneck_forward(x_ncdhw, params):
    """Forward of ResNeXtBottleneck (stride=1, downsample=None, eval-mode BN)."""
    N, Cin, D, H, W = x_ncdhw.shape
    Cmid = params["w1"].shape[0]
    Cout = params["w3"].shape[0]
    assert Cout == Cin, "identity residual requires Cout == Cin"
    P = D * H * W

    x = x_ncdhw.reshape(N, Cin, P)            # free reshape: merges minor dims
    mask = _conv2_boundary_masks(D, H, W)     # constant-folded under jit

    kern = functools.partial(_fused_bottleneck_kernel, D=D, H=H, W=W, Cmid=Cmid)
    out = pl.pallas_call(
        kern,
        out_shape=jax.ShapeDtypeStruct((N, Cout, P), x.dtype),
        grid=(N,),
        in_specs=[
            pl.BlockSpec((1, Cin, P), lambda n: (n, 0, 0)),       # x
            pl.BlockSpec((Cmid, Cin), lambda n: (0, 0)),          # w1
            pl.BlockSpec((Cmid, 1), lambda n: (0, 0)),            # s1
            pl.BlockSpec((Cmid, 1), lambda n: (0, 0)),            # b1
            pl.BlockSpec((Cmid, 27 * Cmid), lambda n: (0, 0)),    # w2 (im2col)
            pl.BlockSpec((Cmid, 1), lambda n: (0, 0)),            # s2
            pl.BlockSpec((Cmid, 1), lambda n: (0, 0)),            # b2
            pl.BlockSpec((Cout, Cmid), lambda n: (0, 0)),         # w3
            pl.BlockSpec((Cout, 1), lambda n: (0, 0)),            # s3
            pl.BlockSpec((Cout, 1), lambda n: (0, 0)),            # b3
            pl.BlockSpec((27, P), lambda n: (0, 0)),              # boundary masks
        ],
        out_specs=pl.BlockSpec((1, Cout, P), lambda n: (n, 0, 0)),
        scratch_shapes=[pltpu.VMEM((27 * Cmid, P), jnp.float32)],  # im2col slab
        compiler_params=pltpu.CompilerParams(
            dimension_semantics=("parallel",)),
    )(x, params["w1"], params["s1"], params["b1"],
      params["w2col"], params["s2"], params["b2"],
      params["w3"], params["s3"], params["b3"], mask)

    return out.reshape(N, Cout, D, H, W)


# ------------------------------ parameter prep ------------------------------- #

def _fold_bn(gamma, beta, mean, var, eps=1e-5):
    s = gamma / jnp.sqrt(var + eps)
    return s.reshape(-1, 1), (beta - mean * s).reshape(-1, 1)


def _expand_grouped_weight_im2col(w2_torch, groups):
    # w2_torch: (Cmid, Cmid//groups, 3, 3, 3)  (PyTorch grouped OIDHW)
    # -> dense (Cmid, 27*Cmid); column index = (kd*9+kh*3+kw)*Cmid + ci
    cmid, cin_pg = w2_torch.shape[0], w2_torch.shape[1]
    opg = cmid // groups
    wfull = jnp.zeros((cmid, cmid, 3, 3, 3), w2_torch.dtype)
    for g in range(groups):
        wfull = wfull.at[g * opg:(g + 1) * opg,
                         g * cin_pg:(g + 1) * cin_pg].set(
            w2_torch[g * opg:(g + 1) * opg])
    return jnp.transpose(wfull, (0, 2, 3, 4, 1)).reshape(cmid, 27 * cmid)


# ----------------------------- pure-JAX reference ----------------------------- #

def _reference_forward(x, raw, cardinality):
    dn = ("NCDHW", "OIDHW", "NCDHW")

    def bn(y, g, b, m, v, eps=1e-5):
        s = g / jnp.sqrt(v + eps)
        return y * s[None, :, None, None, None] + (b - m * s)[None, :, None, None, None]

    y = jax.lax.conv_general_dilated(x, raw["w1"], (1, 1, 1), "VALID",
                                     dimension_numbers=dn,
                                     precision=jax.lax.Precision.HIGHEST)
    y = jax.nn.relu(bn(y, *raw["bn1"]))
    y = jax.lax.conv_general_dilated(y, raw["w2"], (1, 1, 1), [(1, 1)] * 3,
                                     dimension_numbers=dn,
                                     feature_group_count=cardinality,
                                     precision=jax.lax.Precision.HIGHEST)
    y = jax.nn.relu(bn(y, *raw["bn2"]))
    y = jax.lax.conv_general_dilated(y, raw["w3"], (1, 1, 1), "VALID",
                                     dimension_numbers=dn,
                                     precision=jax.lax.Precision.HIGHEST)
    y = bn(y, *raw["bn3"])
    return jax.nn.relu(y + x)


# ----------------------------------- main -------------------------------------- #

if __name__ == "__main__":
    # ResNeXtBottleneck(inplanes=128, planes=64, cardinality=4, stride=1)
    inplanes, planes, cardinality = 128, 64, 4
    expansion = 2
    mid = cardinality * (planes // 32)          # 8
    cout = planes * expansion                   # 128 (== inplanes -> identity residual)
    N, D, H, W = 2, 4, 8, 8

    key = jax.random.PRNGKey(0)
    ks = jax.random.split(key, 16)

    def bn_params(k, c):
        k1, k2, k3, k4 = jax.random.split(k, 4)
        gamma = 1.0 + 0.2 * jax.random.uniform(k1, (c,), jnp.float32, -1.0, 1.0)
        beta = 0.1 * jax.random.normal(k2, (c,), jnp.float32)
        mean = 0.1 * jax.random.normal(k3, (c,), jnp.float32)
        var = jax.random.uniform(k4, (c,), jnp.float32, 0.5, 1.5)
        return gamma, beta, mean, var

    w1 = 0.05 * jax.random.normal(ks[0], (mid, inplanes, 1, 1, 1), jnp.float32)
    w2 = 0.1 * jax.random.normal(ks[1], (mid, mid // cardinality, 3, 3, 3), jnp.float32)
    w3 = 0.05 * jax.random.normal(ks[2], (cout, mid, 1, 1, 1), jnp.float32)
    bn1, bn2, bn3 = bn_params(ks[3], mid), bn_params(ks[4], mid), bn_params(ks[5], cout)

    raw = {"w1": w1, "w2": w2, "w3": w3, "bn1": bn1, "bn2": bn2, "bn3": bn3}

    s1, b1 = _fold_bn(*bn1)
    s2, b2 = _fold_bn(*bn2)
    s3, b3 = _fold_bn(*bn3)
    params = {
        "w1": w1[:, :, 0, 0, 0],                                   # (Cmid, Cin)
        "w2col": _expand_grouped_weight_im2col(w2, cardinality),   # (Cmid, 27*Cmid)
        "w3": w3[:, :, 0, 0, 0],                                   # (Cout, Cmid)
        "s1": s1, "b1": b1, "s2": s2, "b2": b2, "s3": s3, "b3": b3,
    }

    x = jax.random.normal(ks[6], (N, inplanes, D, H, W), jnp.float32)

    fwd = jax.jit(resnext_bottleneck_forward)
    out = jax.block_until_ready(fwd(x, params))

    ref = jax.block_until_ready(_reference_forward(x, raw, cardinality))
    assert out.shape == (N, cout, D, H, W)
    assert jnp.allclose(out, ref, rtol=2e-2, atol=2e-2), (
        f"max abs diff = {float(jnp.max(jnp.abs(out - ref)))}")

    print("KERNEL_OK")
</pallas_src>

<mosaic_0001>
module attributes {stable_mosaic.version = 11 : i64} {
  func.func @_fused_bottleneck_kernel(%arg0: i32, %arg1: memref<1x128x256xf32, #tpu.memory_space<vmem>>, %arg2: memref<8x128xf32, #tpu.memory_space<vmem>>, %arg3: memref<8x1xf32, #tpu.memory_space<vmem>>, %arg4: memref<8x1xf32, #tpu.memory_space<vmem>>, %arg5: memref<8x216xf32, #tpu.memory_space<vmem>>, %arg6: memref<8x1xf32, #tpu.memory_space<vmem>>, %arg7: memref<8x1xf32, #tpu.memory_space<vmem>>, %arg8: memref<128x8xf32, #tpu.memory_space<vmem>>, %arg9: memref<128x1xf32, #tpu.memory_space<vmem>>, %arg10: memref<128x1xf32, #tpu.memory_space<vmem>>, %arg11: memref<27x256xf32, #tpu.memory_space<vmem>>, %arg12: memref<1x128x256xf32, #tpu.memory_space<vmem>>, %arg13: memref<216x256xf32, #tpu.memory_space<vmem>>) attributes {dimension_semantics = [#tpu.dimension_semantics<parallel>], iteration_bounds = array<i64: 2>, scalar_prefetch = 0 : i64, scratch_operands = 1 : i64, tpu.core_type = #tpu.core_type<tc>, window_params = [{transform_indices = @transform_0, window_bounds = array<i64: 1, 128, 256>}, {pipeline_mode = #tpu.pipeline_mode<synchronous>, transform_indices = @transform_1, window_bounds = array<i64: 8, 128>}, {pipeline_mode = #tpu.pipeline_mode<synchronous>, transform_indices = @transform_2, window_bounds = array<i64: 8, 1>}, {pipeline_mode = #tpu.pipeline_mode<synchronous>, transform_indices = @transform_3, window_bounds = array<i64: 8, 1>}, {pipeline_mode = #tpu.pipeline_mode<synchronous>, transform_indices = @transform_4, window_bounds = array<i64: 8, 216>}, {pipeline_mode = #tpu.pipeline_mode<synchronous>, transform_indices = @transform_5, window_bounds = array<i64: 8, 1>}, {pipeline_mode = #tpu.pipeline_mode<synchronous>, transform_indices = @transform_6, window_bounds = array<i64: 8, 1>}, {pipeline_mode = #tpu.pipeline_mode<synchronous>, transform_indices = @transform_7, window_bounds = array<i64: 128, 8>}, {pipeline_mode = #tpu.pipeline_mode<synchronous>, transform_indices = @transform_8, window_bounds = array<i64: 128, 1>}, {pipeline_mode = #tpu.pipeline_mode<synchronous>, transform_indices = @transform_9, window_bounds = array<i64: 128, 1>}, {pipeline_mode = #tpu.pipeline_mode<synchronous>, transform_indices = @transform_10, window_bounds = array<i64: 27, 256>}, {transform_indices = @transform_11, window_bounds = array<i64: 1, 128, 256>}]} {
    %c0 = arith.constant 0 : index
    %c0_0 = arith.constant 0 : index
    %c0_1 = arith.constant 0 : index
    %0 = vector.load %arg1[%c0, %c0_0, %c0_1] : memref<1x128x256xf32, #tpu.memory_space<vmem>>, vector<1x128x256xf32>
    %1 = vector.shape_cast %0 : vector<1x128x256xf32> to vector<128x256xf32>
    %c0_2 = arith.constant 0 : index
    %c0_3 = arith.constant 0 : index
    %2 = vector.load %arg2[%c0_2, %c0_3] : memref<8x128xf32, #tpu.memory_space<vmem>>, vector<8x128xf32>
    %cst = arith.constant dense<0.000000e+00> : vector<8x256xf32>
    %3 = tpu.matmul %2, %1, %cst {dimension_numbers = #tpu.dot_dimension_numbers<[1], [0], [0], [1], [0, 0, 1, 1], [], []>} : vector<8x128xf32>, vector<128x256xf32>, vector<8x256xf32> -> vector<8x256xf32>
    %c0_4 = arith.constant 0 : index
    %c0_5 = arith.constant 0 : index
    %4 = vector.load %arg3[%c0_4, %c0_5] : memref<8x1xf32, #tpu.memory_space<vmem>>, vector<8x1xf32>
    %5 = vector.broadcast %4 : vector<8x1xf32> to vector<8x256xf32>
    %6 = arith.mulf %3, %5 : vector<8x256xf32>
    %c0_6 = arith.constant 0 : index
    %c0_7 = arith.constant 0 : index
    %7 = vector.load %arg4[%c0_6, %c0_7] : memref<8x1xf32, #tpu.memory_space<vmem>>, vector<8x1xf32>
    %8 = vector.broadcast %7 : vector<8x1xf32> to vector<8x256xf32>
    %9 = arith.addf %6, %8 : vector<8x256xf32>
    %cst_8 = arith.constant 0.000000e+00 : f32
    %10 = vector.broadcast %cst_8 : f32 to vector<8x256xf32>
    %11 = arith.maximumf %9, %10 : vector<8x256xf32>
    %12 = tpu.concatenate %11, %11 in 1 : vector<8x256xf32>, vector<8x256xf32> -> vector<8x512xf32>
    %13 = vector.extract_strided_slice %12 {offsets = [0, 183], sizes = [8, 256], strides = [1, 1]} : vector<8x512xf32> to vector<8x256xf32>
    %c0_9 = arith.constant 0 : index
    %c0_10 = arith.constant 0 : index
    %14 = vector.load %arg11[%c0_9, %c0_10] : memref<27x256xf32, #tpu.memory_space<vmem>>, vector<1x256xf32>
    %15 = vector.broadcast %14 : vector<1x256xf32> to vector<8x256xf32>
    %16 = arith.mulf %13, %15 : vector<8x256xf32>
    %c0_11 = arith.constant 0 : index
    %c0_12 = arith.constant 0 : index
    %17 = vector.load %arg13[%c0_11, %c0_12] : memref<216x256xf32, #tpu.memory_space<vmem>>, vector<8x256xf32>
    tpu.vector_store %arg13[%c0_11, %c0_12], %16 {strides = array<i32>} : memref<216x256xf32, #tpu.memory_space<vmem>>, vector<8x256xf32>,
    %18 = vector.extract_strided_slice %12 {offsets = [0, 184], sizes = [8, 256], strides = [1, 1]} : vector<8x512xf32> to vector<8x256xf32>
    %c1 = arith.constant 1 : index
    %c0_13 = arith.constant 0 : index
    %19 = vector.load %arg11[%c1, %c0_13] : memref<27x256xf32, #tpu.memory_space<vmem>>, vector<1x256xf32>
    %20 = vector.broadcast %19 : vector<1x256xf32> to vector<8x256xf32>
    %21 = arith.mulf %18, %20 : vector<8x256xf32>
    %c8 = arith.constant 8 : index
    %c0_14 = arith.constant 0 : index
    %22 = vector.load %arg13[%c8, %c0_14] : memref<216x256xf32, #tpu.memory_space<vmem>>, vector<8x256xf32>
    tpu.vector_store %arg13[%c8, %c0_14], %21 {strides = array<i32>} : memref<216x256xf32, #tpu.memory_space<vmem>>, vector<8x256xf32>,
    %23 = vector.extract_strided_slice %12 {offsets = [0, 185], sizes = [8, 256], strides = [1, 1]} : vector<8x512xf32> to vector<8x256xf32>
    %c2 = arith.constant 2 : index
    %c0_15 = arith.constant 0 : index
    %24 = vector.load %arg11[%c2, %c0_15] : memref<27x256xf32, #tpu.memory_space<vmem>>, vector<1x256xf32>
    %25 = vector.broadcast %24 : vector<1x256xf32> to vector<8x256xf32>
    %26 = arith.mulf %23, %25 : vector<8x256xf32>
    %c16 = arith.constant 16 : index
    %c0_16 = arith.constant 0 : index
    %27 = vector.load %arg13[%c16, %c0_16] : memref<216x256xf32, #tpu.memory_space<vmem>>, vector<8x256xf32>
    tpu.vector_store %arg13[%c16, %c0_16], %26 {strides = array<i32>} : memref<216x256xf32, #tpu.memory_space<vmem>>, vector<8x256xf32>,
    %28 = vector.extract_strided_slice %12 {offsets = [0, 191], sizes = [8, 256], strides = [1, 1]} : vector<8x512xf32> to vector<8x256xf32>
    %c3 = arith.constant 3 : index
    %c0_17 = arith.constant 0 : index
    %29 = vector.load %arg11[%c3, %c0_17] : memref<27x256xf32, #tpu.memory_space<vmem>>, vector<1x256xf32>
    %30 = vector.broadcast %29 : vector<1x256xf32> to vector<8x256xf32>
    %31 = arith.mulf %28, %30 : vector<8x256xf32>
    %c24 = arith.constant 24 : index
    %c0_18 = arith.constant 0 : index
    %32 = vector.load %arg13[%c24, %c0_18] : memref<216x256xf32, #tpu.memory_space<vmem>>, vector<8x256xf32>
    tpu.vector_store %arg13[%c24, %c0_18], %31 {strides = array<i32>} : memref<216x256xf32, #tpu.memory_space<vmem>>, vector<8x256xf32>,
    %33 = vector.extract_strided_slice %12 {offsets = [0, 192], sizes = [8, 256], strides = [1, 1]} : vector<8x512xf32> to vector<8x256xf32>
    %c4 = arith.constant 4 : index
    %c0_19 = arith.constant 0 : index
    %34 = vector.load %arg11[%c4, %c0_19] : memref<27x256xf32, #tpu.memory_space<vmem>>, vector<1x256xf32>
    %35 = vector.broadcast %34 : vector<1x256xf32> to vector<8x256xf32>
    %36 = arith.mulf %33, %35 : vector<8x256xf32>
    %c32 = arith.constant 32 : index
    %c0_20 = arith.constant 0 : index
    %37 = vector.load %arg13[%c32, %c0_20] : memref<216x256xf32, #tpu.memory_space<vmem>>, vector<8x256xf32>
    tpu.vector_store %arg13[%c32, %c0_20], %36 {strides = array<i32>} : memref<216x256xf32, #tpu.memory_space<vmem>>, vector<8x256xf32>,
    %38 = vector.extract_strided_slice %12 {offsets = [0, 193], sizes = [8, 256], strides = [1, 1]} : vector<8x512xf32> to vector<8x256xf32>
    %c5 = arith.constant 5 : index
    %c0_21 = arith.constant 0 : index
    %39 = vector.load %arg11[%c5, %c0_21] : memref<27x256xf32, #tpu.memory_space<vmem>>, vector<1x256xf32>
    %40 = vector.broadcast %39 : vector<1x256xf32> to vector<8x256xf32>
    %41 = arith.mulf %38, %40 : vector<8x256xf32>
    %c40 = arith.constant 40 : index
    %c0_22 = arith.constant 0 : index
    %42 = vector.load %arg13[%c40, %c0_22] : memref<216x256xf32, #tpu.memory_space<vmem>>, vector<8x256xf32>
    tpu.vector_store %arg13[%c40, %c0_22], %41 {strides = array<i32>} : memref<216x256xf32, #tpu.memory_space<vmem>>, vector<8x256xf32>,
    %43 = vector.extract_strided_slice %12 {offsets = [0, 199], sizes = [8, 256], strides = [1, 1]} : vector<8x512xf32> to vector<8x256xf32>
    %c6 = arith.constant 6 : index
    %c0_23 = arith.constant 0 : index
    %44 = vector.load %arg11[%c6, %c0_23] : memref<27x256xf32, #tpu.memory_space<vmem>>, vector<1x256xf32>
    %45 = vector.broadcast %44 : vector<1x256xf32> to vector<8x256xf32>
    %46 = arith.mulf %43, %45 : vector<8x256xf32>
    %c48 = arith.constant 48 : index
    %c0_24 = arith.constant 0 : index
    %47 = vector.load %arg13[%c48, %c0_24] : memref<216x256xf32, #tpu.memory_space<vmem>>, vector<8x256xf32>
    tpu.vector_store %arg13[%c48, %c0_24], %46 {strides = array<i32>} : memref<216x256xf32, #tpu.memory_space<vmem>>, vector<8x256xf32>,
    %48 = vector.extract_strided_slice %12 {offsets = [0, 200], sizes = [8, 256], strides = [1, 1]} : vector<8x512xf32> to vector<8x256xf32>
    %c7 = arith.constant 7 : index
    %c0_25 = arith.constant 0 : index
    %49 = vector.load %arg11[%c7, %c0_25] : memref<27x256xf32, #tpu.memory_space<vmem>>, vector<1x256xf32>
    %50 = vector.broadcast %49 : vector<1x256xf32> to vector<8x256xf32>
    %51 = arith.mulf %48, %50 : vector<8x256xf32>
    %c56 = arith.constant 56 : index
    %c0_26 = arith.constant 0 : index
    %52 = vector.load %arg13[%c56, %c0_26] : memref<216x256xf32, #tpu.memory_space<vmem>>, vector<8x256xf32>
    tpu.vector_store %arg13[%c56, %c0_26], %51 {strides = array<i32>} : memref<216x256xf32, #tpu.memory_space<vmem>>, vector<8x256xf32>,
    %53 = vector.extract_strided_slice %12 {offsets = [0, 201], sizes = [8, 256], strides = [1, 1]} : vector<8x512xf32> to vector<8x256xf32>
    %c8_27 = arith.constant 8 : index
    %c0_28 = arith.constant 0 : index
    %54 = vector.load %arg11[%c8_27, %c0_28] : memref<27x256xf32, #tpu.memory_space<vmem>>, vector<1x256xf32>
    %55 = vector.broadcast %54 : vector<1x256xf32> to vector<8x256xf32>
    %56 = arith.mulf %53, %55 : vector<8x256xf32>
    %c64 = arith.constant 64 : index
    %c0_29 = arith.constant 0 : index
    %57 = vector.load %arg13[%c64, %c0_29] : memref<216x256xf32, #tpu.memory_space<vmem>>, vector<8x256xf32>
    tpu.vector_store %arg13[%c64, %c0_29], %56 {strides = array<i32>} : memref<216x256xf32, #tpu.memory_space<vmem>>, vector<8x256xf32>,
    %58 = vector.extract_strided_slice %12 {offsets = [0, 247], sizes = [8, 256], strides = [1, 1]} : vector<8x512xf32> to vector<8x256xf32>
    %c9 = arith.constant 9 : index
    %c0_30 = arith.constant 0 : index
    %59 = vector.load %arg11[%c9, %c0_30] : memref<27x256xf32, #tpu.memory_space<vmem>>, vector<1x256xf32>
    %60 = vector.broadcast %59 : vector<1x256xf32> to vector<8x256xf32>
    %61 = arith.mulf %58, %60 : vector<8x256xf32>
    %c72 = arith.constant 72 : index
    %c0_31 = arith.constant 0 : index
    %62 = vector.load %arg13[%c72, %c0_31] : memref<216x256xf32, #tpu.memory_space<vmem>>, vector<8x256xf32>
    tpu.vector_store %arg13[%c72, %c0_31], %61 {strides = array<i32>} : memref<216x256xf32, #tpu.memory_space<vmem>>, vector<8x256xf32>,
    %63 = vector.extract_strided_slice %12 {offsets = [0, 248], sizes = [8, 256], strides = [1, 1]} : vector<8x512xf32> to vector<8x256xf32>
    %c10 = arith.constant 10 : index
    %c0_32 = arith.constant 0 : index
    %64 = vector.load %arg11[%c10, %c0_32] : memref<27x256xf32, #tpu.memory_space<vmem>>, vector<1x256xf32>
    %65 = vector.broadcast %64 : vector<1x256xf32> to vector<8x256xf32>
    %66 = arith.mulf %63, %65 : vector<8x256xf32>
    %c80 = arith.constant 80 : index
    %c0_33 = arith.constant 0 : index
    %67 = vector.load %arg13[%c80, %c0_33] : memref<216x256xf32, #tpu.memory_space<vmem>>, vector<8x256xf32>
    tpu.vector_store %arg13[%c80, %c0_33], %66 {strides = array<i32>} : memref<216x256xf32, #tpu.memory_space<vmem>>, vector<8x256xf32>,
    %68 = vector.extract_strided_slice %12 {offsets = [0, 249], sizes = [8, 256], strides = [1, 1]} : vector<8x512xf32> to vector<8x256xf32>
    %c11 = arith.constant 11 : index
    %c0_34 = arith.constant 0 : index
    %69 = vector.load %arg11[%c11, %c0_34] : memref<27x256xf32, #tpu.memory_space<vmem>>, vector<1x256xf32>
    %70 = vector.broadcast %69 : vector<1x256xf32> to vector<8x256xf32>
    %71 = arith.mulf %68, %70 : vector<8x256xf32>
    %c88 = arith.constant 88 : index
    %c0_35 = arith.constant 0 : index
    %72 = vector.load %arg13[%c88, %c0_35] : memref<216x256xf32, #tpu.memory_space<vmem>>, vector<8x256xf32>
    tpu.vector_store %arg13[%c88, %c0_35], %71 {strides = array<i32>} : memref<216x256xf32, #tpu.memory_space<vmem>>, vector<8x256xf32>,
    %73 = vector.extract_strided_slice %12 {offsets = [0, 255], sizes = [8, 256], strides = [1, 1]} : vector<8x512xf32> to vector<8x256xf32>
    %c12 = arith.constant 12 : index
    %c0_36 = arith.constant 0 : index
    %74 = vector.load %arg11[%c12, %c0_36] : memref<27x256xf32, #tpu.memory_space<vmem>>, vector<1x256xf32>
    %75 = vector.broadcast %74 : vector<1x256xf32> to vector<8x256xf32>
    %76 = arith.mulf %73, %75 : vector<8x256xf32>
    %c96 = arith.constant 96 : index
    %c0_37 = arith.constant 0 : index
    %77 = vector.load %arg13[%c96, %c0_37] : memref<216x256xf32, #tpu.memory_space<vmem>>, vector<8x256xf32>
    tpu.vector_store %arg13[%c96, %c0_37], %76 {strides = array<i32>} : memref<216x256xf32, #tpu.memory_space<vmem>>, vector<8x256xf32>,
    %c13 = arith.constant 13 : index
    %c0_38 = arith.constant 0 : index
    %78 = vector.load %arg11[%c13, %c0_38] : memref<27x256xf32, #tpu.memory_space<vmem>>, vector<1x256xf32>
    %79 = vector.broadcast %78 : vector<1x256xf32> to vector<8x256xf32>
    %80 = arith.mulf %11, %79 : vector<8x256xf32>
    %c104 = arith.constant 104 : index
    %c0_39 = arith.constant 0 : index
    %81 = vector.load %arg13[%c104, %c0_39] : memref<216x256xf32, #tpu.memory_space<vmem>>, vector<8x256xf32>
    tpu.vector_store %arg13[%c104, %c0_39], %80 {strides = array<i32>} : memref<216x256xf32, #tpu.memory_space<vmem>>, vector<8x256xf32>,
    %82 = vector.extract_strided_slice %12 {offsets = [0, 1], sizes = [8, 256], strides = [1, 1]} : vector<8x512xf32> to vector<8x256xf32>
    %c14 = arith.constant 14 : index
    %c0_40 = arith.constant 0 : index
    %83 = vector.load %arg11[%c14, %c0_40] : memref<27x256xf32, #tpu.memory_space<vmem>>, vector<1x256xf32>
    %84 = vector.broadcast %83 : vector<1x256xf32> to vector<8x256xf32>
    %85 = arith.mulf %82, %84 : vector<8x256xf32>
    %c112 = arith.constant 112 : index
    %c0_41 = arith.constant 0 : index
    %86 = vector.load %arg13[%c112, %c0_41] : memref<216x256xf32, #tpu.memory_space<vmem>>, vector<8x256xf32>
    tpu.vector_store %arg13[%c112, %c0_41], %85 {strides = array<i32>} : memref<216x256xf32, #tpu.memory_space<vmem>>, vector<8x256xf32>,
    %87 = vector.extract_strided_slice %12 {offsets = [0, 7], sizes = [8, 256], strides = [1, 1]} : vector<8x512xf32> to vector<8x256xf32>
    %c15 = arith.constant 15 : index
    %c0_42 = arith.constant 0 : index
    %88 = vector.load %arg11[%c15, %c0_42] : memref<27x256xf32, #tpu.memory_space<vmem>>, vector<1x256xf32>
    %89 = vector.broadcast %88 : vector<1x256xf32> to vector<8x256xf32>
    %90 = arith.mulf %87, %89 : vector<8x256xf32>
    %c120 = arith.constant 120 : index
    %c0_43 = arith.constant 0 : index
    %91 = vector.load %arg13[%c120, %c0_43] : memref<216x256xf32, #tpu.memory_space<vmem>>, vector<8x256xf32>
    tpu.vector_store %arg13[%c120, %c0_43], %90 {strides = array<i32>} : memref<216x256xf32, #tpu.memory_space<vmem>>, vector<8x256xf32>,
    %92 = vector.extract_strided_slice %12 {offsets = [0, 8], sizes = [8, 256], strides = [1, 1]} : vector<8x512xf32> to vector<8x256xf32>
    %c16_44 = arith.constant 16 : index
    %c0_45 = arith.constant 0 : index
    %93 = vector.load %arg11[%c16_44, %c0_45] : memref<27x256xf32, #tpu.memory_space<vmem>>, vector<1x256xf32>
    %94 = vector.broadcast %93 : vector<1x256xf32> to vector<8x256xf32>
    %95 = arith.mulf %92, %94 : vector<8x256xf32>
    %c128 = arith.constant 128 : index
    %c0_46 = arith.constant 0 : index
    %96 = vector.load %arg13[%c128, %c0_46] : memref<216x256xf32, #tpu.memory_space<vmem>>, vector<8x256xf32>
    tpu.vector_store %arg13[%c128, %c0_46], %95 {strides = array<i32>} : memref<216x256xf32, #tpu.memory_space<vmem>>, vector<8x256xf32>,
    %97 = vector.extract_strided_slice %12 {offsets = [0, 9], sizes = [8, 256], strides = [1, 1]} : vector<8x512xf32> to vector<8x256xf32>
    %c17 = arith.constant 17 : index
    %c0_47 = arith.constant 0 : index
    %98 = vector.load %arg11[%c17, %c0_47] : memref<27x256xf32, #tpu.memory_space<vmem>>, vector<1x256xf32>
    %99 = vector.broadcast %98 : vector<1x256xf32> to vector<8x256xf32>
    %100 = arith.mulf %97, %99 : vector<8x256xf32>
    %c136 = arith.constant 136 : index
    %c0_48 = arith.constant 0 : index
    %101 = vector.load %arg13[%c136, %c0_48] : memref<216x256xf32, #tpu.memory_space<vmem>>, vector<8x256xf32>
    tpu.vector_store %arg13[%c136, %c0_48], %100 {strides = array<i32>} : memref<216x256xf32, #tpu.memory_space<vmem>>, vector<8x256xf32>,
    %102 = vector.extract_strided_slice %12 {offsets = [0, 55], sizes = [8, 256], strides = [1, 1]} : vector<8x512xf32> to vector<8x256xf32>
    %c18 = arith.constant 18 : index
    %c0_49 = arith.constant 0 : index
    %103 = vector.load %arg11[%c18, %c0_49] : memref<27x256xf32, #tpu.memory_space<vmem>>, vector<1x256xf32>
    %104 = vector.broadcast %103 : vector<1x256xf32> to vector<8x256xf32>
    %105 = arith.mulf %102, %104 : vector<8x256xf32>
    %c144 = arith.constant 144 : index
    %c0_50 = arith.constant 0 : index
    %106 = vector.load %arg13[%c144, %c0_50] : memref<216x256xf32, #tpu.memory_space<vmem>>, vector<8x256xf32>
    tpu.vector_store %arg13[%c144, %c0_50], %105 {strides = array<i32>} : memref<216x256xf32, #tpu.memory_space<vmem>>, vector<8x256xf32>,
    %107 = vector.extract_strided_slice %12 {offsets = [0, 56], sizes = [8, 256], strides = [1, 1]} : vector<8x512xf32> to vector<8x256xf32>
    %c19 = arith.constant 19 : index
    %c0_51 = arith.constant 0 : index
    %108 = vector.load %arg11[%c19, %c0_51] : memref<27x256xf32, #tpu.memory_space<vmem>>, vector<1x256xf32>
    %109 = vector.broadcast %108 : vector<1x256xf32> to vector<8x256xf32>
    %110 = arith.mulf %107, %109 : vector<8x256xf32>
    %c152 = arith.constant 152 : index
    %c0_52 = arith.constant 0 : index
    %111 = vector.load %arg13[%c152, %c0_52] : memref<216x256xf32, #tpu.memory_space<vmem>>, vector<8x256xf32>
    tpu.vector_store %arg13[%c152, %c0_52], %110 {strides = array<i32>} : memref<216x256xf32, #tpu.memory_space<vmem>>, vector<8x256xf32>,
    %112 = vector.extract_strided_slice %12 {offsets = [0, 57], sizes = [8, 256], strides = [1, 1]} : vector<8x512xf32> to vector<8x256xf32>
    %c20 = arith.constant 20 : index
    %c0_53 = arith.constant 0 : index
    %113 = vector.load %arg11[%c20, %c0_53] : memref<27x256xf32, #tpu.memory_space<vmem>>, vector<1x256xf32>
    %114 = vector.broadcast %113 : vector<1x256xf32> to vector<8x256xf32>
    %115 = arith.mulf %112, %114 : vector<8x256xf32>
    %c160 = arith.constant 160 : index
    %c0_54 = arith.constant 0 : index
    %116 = vector.load %arg13[%c160, %c0_54] : memref<216x256xf32, #tpu.memory_space<vmem>>, vector<8x256xf32>
    tpu.vector_store %arg13[%c160, %c0_54], %115 {strides = array<i32>} : memref<216x256xf32, #tpu.memory_space<vmem>>, vector<8x256xf32>,
    %117 = vector.extract_strided_slice %12 {offsets = [0, 63], sizes = [8, 256], strides = [1, 1]} : vector<8x512xf32> to vector<8x256xf32>
    %c21 = arith.constant 21 : index
    %c0_55 = arith.constant 0 : index
    %118 = vector.load %arg11[%c21, %c0_55] : memref<27x256xf32, #tpu.memory_space<vmem>>, vector<1x256xf32>
    %119 = vector.broadcast %118 : vector<1x256xf32> to vector<8x256xf32>
    %120 = arith.mulf %117, %119 : vector<8x256xf32>
    %c168 = arith.constant 168 : index
    %c0_56 = arith.constant 0 : index
    %121 = vector.load %arg13[%c168, %c0_56] : memref<216x256xf32, #tpu.memory_space<vmem>>, vector<8x256xf32>
    tpu.vector_store %arg13[%c168, %c0_56], %120 {strides = array<i32>} : memref<216x256xf32, #tpu.memory_space<vmem>>, vector<8x256xf32>,
    %122 = vector.extract_strided_slice %12 {offsets = [0, 64], sizes = [8, 256], strides = [1, 1]} : vector<8x512xf32> to vector<8x256xf32>
    %c22 = arith.constant 22 : index
    %c0_57 = arith.constant 0 : index
    %123 = vector.load %arg11[%c22, %c0_57] : memref<27x256xf32, #tpu.memory_space<vmem>>, vector<1x256xf32>
    %124 = vector.broadcast %123 : vector<1x256xf32> to vector<8x256xf32>
    %125 = arith.mulf %122, %124 : vector<8x256xf32>
    %c176 = arith.constant 176 : index
    %c0_58 = arith.constant 0 : index
    %126 = vector.load %arg13[%c176, %c0_58] : memref<216x256xf32, #tpu.memory_space<vmem>>, vector<8x256xf32>
    tpu.vector_store %arg13[%c176, %c0_58], %125 {strides = array<i32>} : memref<216x256xf32, #tpu.memory_space<vmem>>, vector<8x256xf32>,
    %127 = vector.extract_strided_slice %12 {offsets = [0, 65], sizes = [8, 256], strides = [1, 1]} : vector<8x512xf32> to vector<8x256xf32>
    %c23 = arith.constant 23 : index
    %c0_59 = arith.constant 0 : index
    %128 = vector.load %arg11[%c23, %c0_59] : memref<27x256xf32, #tpu.memory_space<vmem>>, vector<1x256xf32>
    %129 = vector.broadcast %128 : vector<1x256xf32> to vector<8x256xf32>
    %130 = arith.mulf %127, %129 : vector<8x256xf32>
    %c184 = arith.constant 184 : index
    %c0_60 = arith.constant 0 : index
    %131 = vector.load %arg13[%c184, %c0_60] : memref<216x256xf32, #tpu.memory_space<vmem>>, vector<8x256xf32>
    tpu.vector_store %arg13[%c184, %c0_60], %130 {strides = array<i32>} : memref<216x256xf32, #tpu.memory_space<vmem>>, vector<8x256xf32>,
    %132 = vector.extract_strided_slice %12 {offsets = [0, 71], sizes = [8, 256], strides = [1, 1]} : vector<8x512xf32> to vector<8x256xf32>
    %c24_61 = arith.constant 24 : index
    %c0_62 = arith.constant 0 : index
    %133 = vector.load %arg11[%c24_61, %c0_62] : memref<27x256xf32, #tpu.memory_space<vmem>>, vector<1x256xf32>
    %134 = vector.broadcast %133 : vector<1x256xf32> to vector<8x256xf32>
    %135 = arith.mulf %132, %134 : vector<8x256xf32>
    %c192 = arith.constant 192 : index
    %c0_63 = arith.constant 0 : index
    %136 = vector.load %arg13[%c192, %c0_63] : memref<216x256xf32, #tpu.memory_space<vmem>>, vector<8x256xf32>
    tpu.vector_store %arg13[%c192, %c0_63], %135 {strides = array<i32>} : memref<216x256xf32, #tpu.memory_space<vmem>>, vector<8x256xf32>,
    %137 = vector.extract_strided_slice %12 {offsets = [0, 72], sizes = [8, 256], strides = [1, 1]} : vector<8x512xf32> to vector<8x256xf32>
    %c25 = arith.constant 25 : index
    %c0_64 = arith.constant 0 : index
    %138 = vector.load %arg11[%c25, %c0_64] : memref<27x256xf32, #tpu.memory_space<vmem>>, vector<1x256xf32>
    %139 = vector.broadcast %138 : vector<1x256xf32> to vector<8x256xf32>
    %140 = arith.mulf %137, %139 : vector<8x256xf32>
    %c200 = arith.constant 200 : index
    %c0_65 = arith.constant 0 : index
    %141 = vector.load %arg13[%c200, %c0_65] : memref<216x256xf32, #tpu.memory_space<vmem>>, vector<8x256xf32>
    tpu.vector_store %arg13[%c200, %c0_65], %140 {strides = array<i32>} : memref<216x256xf32, #tpu.memory_space<vmem>>, vector<8x256xf32>,
    %142 = vector.extract_strided_slice %12 {offsets = [0, 73], sizes = [8, 256], strides = [1, 1]} : vector<8x512xf32> to vector<8x256xf32>
    %c26 = arith.constant 26 : index
    %c0_66 = arith.constant 0 : index
    %143 = vector.load %arg11[%c26, %c0_66] : memref<27x256xf32, #tpu.memory_space<vmem>>, vector<1x256xf32>
    %144 = vector.broadcast %143 : vector<1x256xf32> to vector<8x256xf32>
    %145 = arith.mulf %142, %144 : vector<8x256xf32>
    %c208 = arith.constant 208 : index
    %c0_67 = arith.constant 0 : index
    %146 = vector.load %arg13[%c208, %c0_67] : memref<216x256xf32, #tpu.memory_space<vmem>>, vector<8x256xf32>
    tpu.vector_store %arg13[%c208, %c0_67], %145 {strides = array<i32>} : memref<216x256xf32, #tpu.memory_space<vmem>>, vector<8x256xf32>,
    %c0_68 = arith.constant 0 : index
    %c0_69 = arith.constant 0 : index
    %147 = vector.load %arg5[%c0_68, %c0_69] : memref<8x216xf32, #tpu.memory_space<vmem>>, vector<8x216xf32>
    %c0_70 = arith.constant 0 : index
    %c0_71 = arith.constant 0 : index
    %148 = vector.load %arg13[%c0_70, %c0_71] : memref<216x256xf32, #tpu.memory_space<vmem>>, vector<216x256xf32>
    %cst_72 = arith.constant dense<0.000000e+00> : vector<8x256xf32>
    %149 = tpu.matmul %147, %148, %cst_72 {dimension_numbers = #tpu.dot_dimension_numbers<[1], [0], [0], [1], [0, 0, 1, 1], [], []>} : vector<8x216xf32>, vector<216x256xf32>, vector<8x256xf32> -> vector<8x256xf32>
    %c0_73 = arith.constant 0 : index
    %c0_74 = arith.constant 0 : index
    %150 = vector.load %arg6[%c0_73, %c0_74] : memref<8x1xf32, #tpu.memory_space<vmem>>, vector<8x1xf32>
    %151 = vector.broadcast %150 : vector<8x1xf32> to vector<8x256xf32>
    %152 = arith.mulf %149, %151 : vector<8x256xf32>
    %c0_75 = arith.constant 0 : index
    %c0_76 = arith.constant 0 : index
    %153 = vector.load %arg7[%c0_75, %c0_76] : memref<8x1xf32, #tpu.memory_space<vmem>>, vector<8x1xf32>
    %154 = vector.broadcast %153 : vector<8x1xf32> to vector<8x256xf32>
    %155 = arith.addf %152, %154 : vector<8x256xf32>
    %cst_77 = arith.constant 0.000000e+00 : f32
    %156 = vector.broadcast %cst_77 : f32 to vector<8x256xf32>
    %157 = arith.maximumf %155, %156 : vector<8x256xf32>
    %c0_78 = arith.constant 0 : index
    %c0_79 = arith.constant 0 : index
    %158 = vector.load %arg8[%c0_78, %c0_79] : memref<128x8xf32, #tpu.memory_space<vmem>>, vector<128x8xf32>
    %cst_80 = arith.constant dense<0.000000e+00> : vector<128x256xf32>
    %159 = tpu.matmul %158, %157, %cst_80 {dimension_numbers = #tpu.dot_dimension_numbers<[1], [0], [0], [1], [0, 0, 1, 1], [], []>} : vector<128x8xf32>, vector<8x256xf32>, vector<128x256xf32> -> vector<128x256xf32>
    %c0_81 = arith.constant 0 : index
    %c0_82 = arith.constant 0 : index
    %160 = vector.load %arg9[%c0_81, %c0_82] : memref<128x1xf32, #tpu.memory_space<vmem>>, vector<128x1xf32>
    %161 = vector.broadcast %160 : vector<128x1xf32> to vector<128x256xf32>
    %162 = arith.mulf %159, %161 : vector<128x256xf32>
    %c0_83 = arith.constant 0 : index
    %c0_84 = arith.constant 0 : index
    %163 = vector.load %arg10[%c0_83, %c0_84] : memref<128x1xf32, #tpu.memory_space<vmem>>, vector<128x1xf32>
    %164 = vector.broadcast %163 : vector<128x1xf32> to vector<128x256xf32>
    %165 = arith.addf %162, %164 : vector<128x256xf32>
    %166 = arith.addf %165, %1 : vector<128x256xf32>
    %cst_85 = arith.constant 0.000000e+00 : f32
    %167 = vector.broadcast %cst_85 : f32 to vector<128x256xf32>
    %168 = arith.maximumf %166, %167 : vector<128x256xf32>
    %c0_86 = arith.constant 0 : index
    %c0_87 = arith.constant 0 : index
    %c0_88 = arith.constant 0 : index
    %169 = vector.load %arg12[%c0_86, %c0_87, %c0_88] : memref<1x128x256xf32, #tpu.memory_space<vmem>>, vector<1x128x256xf32>
    %170 = vector.shape_cast %169 : vector<1x128x256xf32> to vector<128x256xf32>
    %171 = vector.shape_cast %168 : vector<128x256xf32> to vector<1x128x256xf32>
    tpu.vector_store %arg12[%c0_86, %c0_87, %c0_88], %171 {strides = array<i32>} : memref<1x128x256xf32, #tpu.memory_space<vmem>>, vector<1x128x256xf32>,
    return
  }
  func.func @transform_0(%arg0: i32) -> (i32, i32, i32) {
    %c0_i32 = arith.constant 0 : i32
    %c0_i32_0 = arith.constant 0 : i32
    %c0_i32_1 = arith.constant 0 : i32
    return %arg0, %c0_i32, %c0_i32_0 : i32, i32, i32
  }
  func.func @transform_1(%arg0: i32) -> (i32, i32) {
    %c0_i32 = arith.constant 0 : i32
    %c0_i32_0 = arith.constant 0 : i32
    %c0_i32_1 = arith.constant 0 : i32
    return %c0_i32, %c0_i32_0 : i32, i32
  }
  func.func @transform_2(%arg0: i32) -> (i32, i32) {
    %c0_i32 = arith.constant 0 : i32
    %c0_i32_0 = arith.constant 0 : i32
    %c0_i32_1 = arith.constant 0 : i32
    return %c0_i32, %c0_i32_0 : i32, i32
  }
  func.func @transform_3(%arg0: i32) -> (i32, i32) {
    %c0_i32 = arith.constant 0 : i32
    %c0_i32_0 = arith.constant 0 : i32
    %c0_i32_1 = arith.constant 0 : i32
    return %c0_i32, %c0_i32_0 : i32, i32
  }
  func.func @transform_4(%arg0: i32) -> (i32, i32) {
    %c0_i32 = arith.constant 0 : i32
    %c0_i32_0 = arith.constant 0 : i32
    %c0_i32_1 = arith.constant 0 : i32
    return %c0_i32, %c0_i32_0 : i32, i32
  }
  func.func @transform_5(%arg0: i32) -> (i32, i32) {
    %c0_i32 = arith.constant 0 : i32
    %c0_i32_0 = arith.constant 0 : i32
    %c0_i32_1 = arith.constant 0 : i32
    return %c0_i32, %c0_i32_0 : i32, i32
  }
  func.func @transform_6(%arg0: i32) -> (i32, i32) {
    %c0_i32 = arith.constant 0 : i32
    %c0_i32_0 = arith.constant 0 : i32
    %c0_i32_1 = arith.constant 0 : i32
    return %c0_i32, %c0_i32_0 : i32, i32
  }
  func.func @transform_7(%arg0: i32) -> (i32, i32) {
    %c0_i32 = arith.constant 0 : i32
    %c0_i32_0 = arith.constant 0 : i32
    %c0_i32_1 = arith.constant 0 : i32
    return %c0_i32, %c0_i32_0 : i32, i32
  }
  func.func @transform_8(%arg0: i32) -> (i32, i32) {
    %c0_i32 = arith.constant 0 : i32
    %c0_i32_0 = arith.constant 0 : i32
    %c0_i32_1 = arith.constant 0 : i32
    return %c0_i32, %c0_i32_0 : i32, i32
  }
  func.func @transform_9(%arg0: i32) -> (i32, i32) {
    %c0_i32 = arith.constant 0 : i32
    %c0_i32_0 = arith.constant 0 : i32
    %c0_i32_1 = arith.constant 0 : i32
    return %c0_i32, %c0_i32_0 : i32, i32
  }
  func.func @transform_10(%arg0: i32) -> (i32, i32) {
    %c0_i32 = arith.constant 0 : i32
    %c0_i32_0 = arith.constant 0 : i32
    %c0_i32_1 = arith.constant 0 : i32
    return %c0_i32, %c0_i32_0 : i32, i32
  }
  func.func @transform_11(%arg0: i32) -> (i32, i32, i32) {
    %c0_i32 = arith.constant 0 : i32
    %c0_i32_0 = arith.constant 0 : i32
    %c0_i32_1 = arith.constant 0 : i32
    return %arg0, %c0_i32, %c0_i32_0 : i32, i32, i32
  }
}

</mosaic_0001>

<llo_original>
// kernel: resnext_bottleneck_forward.1
$region0: #{resnext_bottleneck_forward.1}
  #allocation0 [shape = 'u32[]', space=smem, size = 0x4, offset = 0x4, fixed_abs, tag = 'smem constant byte address 0x4 - core index']
  #allocation1 [shape = 'u32[144,128]{1,0:T(1,128)}', space=vmem, size = 0x12000, scoped, tag = 'internal scratch']
  #allocation2 [shape = 'f32[216,256]{1,0:T(8,128)}', space=vmem, size = 0x36000, scoped, tag = 'scratch operand']
  %s0 = inlined_call_operand.vmem [shape: f32[2,128,256], index: 0, kind: input, shape index: {}]
  %s1 = inlined_call_operand.vmem [shape: f32[8,128], index: 1, kind: input, shape index: {}]
  %s2 = inlined_call_operand.vmem [shape: f32[8,1], index: 2, kind: input, shape index: {}]
  %s3 = inlined_call_operand.vmem [shape: f32[8,1], index: 3, kind: input, shape index: {}]
  %s4 = inlined_call_operand.vmem [shape: f32[8,216], index: 4, kind: input, shape index: {}]
  %s5 = inlined_call_operand.vmem [shape: f32[8,1], index: 5, kind: input, shape index: {}]
  %s6 = inlined_call_operand.vmem [shape: f32[8,1], index: 6, kind: input, shape index: {}]
  %s7 = inlined_call_operand.vmem [shape: f32[128,8], index: 7, kind: input, shape index: {}]
  %s8 = inlined_call_operand.vmem [shape: f32[128,1], index: 8, kind: input, shape index: {}]
  %s9 = inlined_call_operand.vmem [shape: f32[128,1], index: 9, kind: input, shape index: {}]
  %s10 = inlined_call_operand.vmem [shape: f32[27,256], index: 10, kind: input, shape index: {}]
  %s11 = inlined_call_operand.vmem [shape: f32[2,128,256], index: 11, kind: output, shape index: {}]
  %s12 = sld [smem:[#allocation0]]
  $region77: #{resnext_bottleneck_forward.1} parent=0
    _
  %s14 = ssub.s32 1, %s12
  %s15 = scalar_select 0, %s14, %s12
  loop: start=0, step=1, limit=4
  $region2: #{resnext_bottleneck_forward.1} parent=0 // loop_pre_header
    _
  $region3: #{resnext_bottleneck_forward.1} parent=0 // loop_header
    %s17 = sphi 0, %s21
    %p18 = scmp.ge.s32.totalorder %s17, 4
    %s27 = sphi 0, %s29
    %s30 = sphi 0, %s27
    %s31 = sphi 0, %s30
    %s47 = sphi 0, %s31
    %s51 = sphi 0, %s51
    %s53 = sphi 0, %s51
    %s54 = sphi 0, %s53
    %s68 = sphi 0, %s54
    %s72 = sphi 0, %s72
    %s74 = sphi 0, %s72
    %s75 = sphi 0, %s74
    %s89 = sphi 0, %s75
    %s93 = sphi 0, %s93
    %s95 = sphi 0, %s93
    %s96 = sphi 0, %s95
    %s110 = sphi 0, %s96
    %s114 = sphi 0, %s114
    %s116 = sphi 0, %s114
    %s117 = sphi 0, %s116
    %s131 = sphi 0, %s117
    %s135 = sphi 0, %s135
    %s137 = sphi 0, %s135
    %s138 = sphi 0, %s137
    %s152 = sphi 0, %s138
    %s156 = sphi 0, %s156
    %s158 = sphi 0, %s156
    %s159 = sphi 0, %s158
    %s173 = sphi 0, %s159
    %s177 = sphi 0, %s177
    %s179 = sphi 0, %s177
    %s180 = sphi 0, %s179
    %s194 = sphi 0, %s180
    %s198 = sphi 0, %s198
    %s200 = sphi 0, %s198
    %s201 = sphi 0, %s200
    %s215 = sphi 0, %s201
    %s219 = sphi 0, %s219
    %s221 = sphi 0, %s219
    %s222 = sphi 0, %s221
    %s236 = sphi 0, %s222
    %s240 = sphi 0, %s240
    %s242 = sphi 0, %s240
    %s243 = sphi 0, %s242
    %s257 = sphi 0, %s243
    %s263 = sphi 0, %s265
    %s266 = sphi 0, %s263
    %s267 = sphi 0, %s266
    %s283 = sphi 0, %s267
  $region4: #{resnext_bottleneck_forward.1} parent=0 // loop_header_branch
    %20 = sbr.rel (%p18) target = $region8
  $region5: #{resnext_bottleneck_forward.1} parent=0 // loop_body
    %s22 = ssub.s32 %s17, 1
    %s23 = ssub.s32 %s17, 2
    %s24 = sadd.s32 %s17, 1
    %s25 = ssub.s32 %s17, %s24
    %p26 = scmp.eq.s32.totalorder %s25, 0
    %s28 = sadd.s32 %s27, 1
    %s29 = scalar_select %p26, %s27, %s28
    %p32 = pneg %p26
    %p33 = scmp.eq.s32.totalorder %s17, 1
    %p34 = por %p32, %p33
    %p35 = scmp.ne.s32.totalorder %s27, %s30
    %p36 = scmp.eq.s32.totalorder %s17, 0
    %p37 = por %p35, %p36
    %p38 = scmp.ne.s32.totalorder %s27, %s30
    %p39 = scmp.eq.s32.totalorder %s22, 1
    %p40 = por %p38, %p39
    %p41 = scmp.ne.s32.totalorder %s30, %s31
    %p42 = scmp.eq.s32.totalorder %s22, 0
    %p43 = por %p41, %p42
    %p44 = scmp.ne.s32.totalorder %s30, %s31
    %p45 = scmp.eq.s32.totalorder %s23, 1
    %p46 = por %p44, %p45
    %p48 = scmp.ne.s32.totalorder %s31, %s47
    %p49 = scmp.eq.s32.totalorder %s23, 0
    %p50 = por %p48, %p49
    %s52 = sadd.s32 %s51, 1
    %p55 = scmp.eq.s32.totalorder %s17, 1
    %p56 = scmp.ne.s32.totalorder %s51, %s53
    %p57 = scmp.eq.s32.totalorder %s17, 0
    %p58 = por %p56, %p57
    %p59 = scmp.ne.s32.totalorder %s51, %s53
    %p60 = scmp.eq.s32.totalorder %s22, 1
    %p61 = por %p59, %p60
    %p62 = scmp.ne.s32.totalorder %s53, %s54
    %p63 = scmp.eq.s32.totalorder %s22, 0
    %p64 = por %p62, %p63
    %p65 = scmp.ne.s32.totalorder %s53, %s54
    %p66 = scmp.eq.s32.totalorder %s23, 1
    %p67 = por %p65, %p66
    %p69 = scmp.ne.s32.totalorder %s54, %s68
    %p70 = scmp.eq.s32.totalorder %s23, 0
    %p71 = por %p69, %p70
    %s73 = sadd.s32 %s72, 1
    %p76 = scmp.eq.s32.totalorder %s17, 1
    %p77 = scmp.ne.s32.totalorder %s72, %s74
    %p78 = scmp.eq.s32.totalorder %s17, 0
    %p79 = por %p77, %p78
    %p80 = scmp.ne.s32.totalorder %s72, %s74
    %p81 = scmp.eq.s32.totalorder %s22, 1
    %p82 = por %p80, %p81
    %p83 = scmp.ne.s32.totalorder %s74, %s75
    %p84 = scmp.eq.s32.totalorder %s22, 0
    %p85 = por %p83, %p84
    %p86 = scmp.ne.s32.totalorder %s74, %s75
    %p87 = scmp.eq.s32.totalorder %s23, 1
    %p88 = por %p86, %p87
    %p90 = scmp.ne.s32.totalorder %s75, %s89
    %p91 = scmp.eq.s32.totalorder %s23, 0
    %p92 = por %p90, %p91
    %s94 = sadd.s32 %s93, 1
    %p97 = scmp.eq.s32.totalorder %s17, 1
    %p98 = scmp.ne.s32.totalorder %s93, %s95
    %p99 = scmp.eq.s32.totalorder %s17, 0
    %p100 = por %p98, %p99
    %p101 = scmp.ne.s32.totalorder %s93, %s95
    %p102 = scmp.eq.s32.totalorder %s22, 1
    %p103 = por %p101, %p102
    %p104 = scmp.ne.s32.totalorder %s95, %s96
    %p105 = scmp.eq.s32.totalorder %s22, 0
    %p106 = por %p104, %p105
    %p107 = scmp.ne.s32.totalorder %s95, %s96
    %p108 = scmp.eq.s32.totalorder %s23, 1
    %p109 = por %p107, %p108
    %p111 = scmp.ne.s32.totalorder %s96, %s110
    %p112 = scmp.eq.s32.totalorder %s23, 0
    %p113 = por %p111, %p112
    %s115 = sadd.s32 %s114, 1
    %p118 = scmp.eq.s32.totalorder %s17, 1
    %p119 = scmp.ne.s32.totalorder %s114, %s116
    %p120 = scmp.eq.s32.totalorder %s17, 0
    %p121 = por %p119, %p120
    %p122 = scmp.ne.s32.totalorder %s114, %s116
    %p123 = scmp.eq.s32.totalorder %s22, 1
    %p124 = por %p122, %p123
    %p125 = scmp.ne.s32.totalorder %s116, %s117
    %p126 = scmp.eq.s32.totalorder %s22, 0
    %p127 = por %p125, %p126
    %p128 = scmp.ne.s32.totalorder %s116, %s117
    %p129 = scmp.eq.s32.totalorder %s23, 1
    %p130 = por %p128, %p129
    %p132 = scmp.ne.s32.totalorder %s117, %s131
    %p133 = scmp.eq.s32.totalorder %s23, 0
    %p134 = por %p132, %p133
    %s136 = sadd.s32 %s135, 1
    %p139 = scmp.eq.s32.totalorder %s17, 1
    %p140 = scmp.ne.s32.totalorder %s135, %s137
    %p141 = scmp.eq.s32.totalorder %s17, 0
    %p142 = por %p140, %p141
    %p143 = scmp.ne.s32.totalorder %s135, %s137
    %p144 = scmp.eq.s32.totalorder %s22, 1
    %p145 = por %p143, %p144
    %p146 = scmp.ne.s32.totalorder %s137, %s138
    %p147 = scmp.eq.s32.totalorder %s22, 0
    %p148 = por %p146, %p147
    %p149 = scmp.ne.s32.totalorder %s137, %s138
    %p150 = scmp.eq.s32.totalorder %s23, 1
    %p151 = por %p149, %p150
    %p153 = scmp.ne.s32.totalorder %s138, %s152
    %p154 = scmp.eq.s32.totalorder %s23, 0
    %p155 = por %p153, %p154
    %s157 = sadd.s32 %s156, 1
    %p160 = scmp.eq.s32.totalorder %s17, 1
    %p161 = scmp.ne.s32.totalorder %s156, %s158
    %p162 = scmp.eq.s32.totalorder %s17, 0
    %p163 = por %p161, %p162
    %p164 = scmp.ne.s32.totalorder %s156, %s158
    %p165 = scmp.eq.s32.totalorder %s22, 1
    %p166 = por %p164, %p165
    %p167 = scmp.ne.s32.totalorder %s158, %s159
    %p168 = scmp.eq.s32.totalorder %s22, 0
    %p169 = por %p167, %p168
    %p170 = scmp.ne.s32.totalorder %s158, %s159
    %p171 = scmp.eq.s32.totalorder %s23, 1
    %p172 = por %p170, %p171
    %p174 = scmp.ne.s32.totalorder %s159, %s173
    %p175 = scmp.eq.s32.totalorder %s23, 0
    %p176 = por %p174, %p175
    %s178 = sadd.s32 %s177, 1
    %p181 = scmp.eq.s32.totalorder %s17, 1
    %p182 = scmp.ne.s32.totalorder %s177, %s179
    %p183 = scmp.eq.s32.totalorder %s17, 0
    %p184 = por %p182, %p183
    %p185 = scmp.ne.s32.totalorder %s177, %s179
    %p186 = scmp.eq.s32.totalorder %s22, 1
    %p187 = por %p185, %p186
    %p188 = scmp.ne.s32.totalorder %s179, %s180
    %p189 = scmp.eq.s32.totalorder %s22, 0
    %p190 = por %p188, %p189
    %p191 = scmp.ne.s32.totalorder %s179, %s180
    %p192 = scmp.eq.s32.totalorder %s23, 1
    %p193 = por %p191, %p192
    %p195 = scmp.ne.s32.totalorder %s180, %s194
    %p196 = scmp.eq.s32.totalorder %s23, 0
    %p197 = por %p195, %p196
    %s199 = sadd.s32 %s198, 1
    %p202 = scmp.eq.s32.totalorder %s17, 1
    %p203 = scmp.ne.s32.totalorder %s198, %s200
    %p204 = scmp.eq.s32.totalorder %s17, 0
    %p205 = por %p203, %p204
    %p206 = scmp.ne.s32.totalorder %s198, %s200
    %p207 = scmp.eq.s32.totalorder %s22, 1
    %p208 = por %p206, %p207
    %p209 = scmp.ne.s32.totalorder %s200, %s201
    %p210 = scmp.eq.s32.totalorder %s22, 0
    %p211 = por %p209, %p210
    %p212 = scmp.ne.s32.totalorder %s200, %s201
    %p213 = scmp.eq.s32.totalorder %s23, 1
    %p214 = por %p212, %p213
    %p216 = scmp.ne.s32.totalorder %s201, %s215
    %p217 = scmp.eq.s32.totalorder %s23, 0
    %p218 = por %p216, %p217
    %s220 = sadd.s32 %s219, 1
    %p223 = scmp.eq.s32.totalorder %s17, 1
    %p224 = scmp.ne.s32.totalorder %s219, %s221
    %p225 = scmp.eq.s32.totalorder %s17, 0
    %p226 = por %p224, %p225
    %p227 = scmp.ne.s32.totalorder %s219, %s221
    %p228 = scmp.eq.s32.totalorder %s22, 1
    %p229 = por %p227, %p228
    %p230 = scmp.ne.s32.totalorder %s221, %s222
    %p231 = scmp.eq.s32.totalorder %s22, 0
    %p232 = por %p230, %p231
    %p233 = scmp.ne.s32.totalorder %s221, %s222
    %p234 = scmp.eq.s32.totalorder %s23, 1
    %p235 = por %p233, %p234
    %p237 = scmp.ne.s32.totalorder %s222, %s236
    %p238 = scmp.eq.s32.totalorder %s23, 0
    %p239 = por %p237, %p238
    %s241 = sadd.s32 %s240, 1
    %p244 = scmp.eq.s32.totalorder %s17, 1
    %p245 = scmp.ne.s32.totalorder %s240, %s242
    %p246 = scmp.eq.s32.totalorder %s17, 0
    %p247 = por %p245, %p246
    %p248 = scmp.ne.s32.totalorder %s240, %s242
    %p249 = scmp.eq.s32.totalorder %s22, 1
    %p250 = por %p248, %p249
    %p251 = scmp.ne.s32.totalorder %s242, %s243
    %p252 = scmp.eq.s32.totalorder %s22, 0
    %p253 = por %p251, %p252
    %p254 = scmp.ne.s32.totalorder %s242, %s243
    %p255 = scmp.eq.s32.totalorder %s23, 1
    %p256 = por %p254, %p255
    %p258 = scmp.ne.s32.totalorder %s243, %s257
    %p259 = scmp.eq.s32.totalorder %s23, 0
    %p260 = por %p258, %p259
    %s261 = ssub.s32 %s17, %s24
    %p262 = scmp.eq.s32.totalorder %s261, 0
    %s264 = sadd.s32 %s263, 1
    %s265 = scalar_select %p262, %s263, %s264
    %p268 = pneg %p262
    %p269 = scmp.eq.s32.totalorder %s17, 1
    %p270 = por %p268, %p269
    %p271 = scmp.ne.s32.totalorder %s263, %s266
    %p272 = scmp.eq.s32.totalorder %s17, 0
    %p273 = por %p271, %p272
    %p274 = scmp.ne.s32.totalorder %s263, %s266
    %p275 = scmp.eq.s32.totalorder %s22, 1
    %p276 = por %p274, %p275
    %p277 = scmp.ne.s32.totalorder %s266, %s267
    %p278 = scmp.eq.s32.totalorder %s22, 0
    %p279 = por %p277, %p278
    %p280 = scmp.ne.s32.totalorder %s266, %s267
    %p281 = scmp.eq.s32.totalorder %s23, 1
    %p282 = por %p280, %p281
    %p284 = scmp.ne.s32.totalorder %s267, %s283
    %p285 = scmp.eq.s32.totalorder %s23, 0
    %p286 = por %p284, %p285
    %p287 = scmp.le.s32.totalorder 1, %s17
    %p288 = scmp.lt.s32.totalorder %s17, 3
    %p289 = pnand %p287, %p288
    %p290 = pneg %p289
    // Predicated region
    $region9: #{resnext_bottleneck_forward.1} parent=5 // pred_check
      _
    $region10: #{resnext_bottleneck_forward.1} parent=5 // pred_check_branch
      %292 = sbr.rel (%p289) target = $region12
    $region11: #{resnext_bottleneck_forward.1} parent=5 // pred_region
      %s293 = ssub.s32 %s17, 1
      // Predicated region
      $region13: #{resnext_bottleneck_forward.1} parent=11 // pred_check
        %p294 = pneg %p64
      $region14: #{resnext_bottleneck_forward.1} parent=11 // pred_check_branch
        %296 = sbr.rel (%p294) target = $region16
      $region15: #{resnext_bottleneck_forward.1} parent=11 // pred_region
        _
      $region16: #{resnext_bottleneck_forward.1} parent=11 // pred_fallthru
        _
      // Predicated region
      $region17: #{resnext_bottleneck_forward.1} parent=11 // pred_check
        %p297 = pneg %p85
      $region18: #{resnext_bottleneck_forward.1} parent=11 // pred_check_branch
        %299 = sbr.rel (%p297) target = $region20
      $region19: #{resnext_bottleneck_forward.1} parent=11 // pred_region
        _
      $region20: #{resnext_bottleneck_forward.1} parent=11 // pred_fallthru
        _
      // Predicated region
      $region21: #{resnext_bottleneck_forward.1} parent=11 // pred_check
        %p300 = pneg %p106
      $region22: #{resnext_bottleneck_forward.1} parent=11 // pred_check_branch
        %302 = sbr.rel (%p300) target = $region24
      $region23: #{resnext_bottleneck_forward.1} parent=11 // pred_region
        _
      $region24: #{resnext_bottleneck_forward.1} parent=11 // pred_fallthru
        _
      // Predicated region
      $region25: #{resnext_bottleneck_forward.1} parent=11 // pred_check
        %p303 = pneg %p127
      $region26: #{resnext_bottleneck_forward.1} parent=11 // pred_check_branch
        %305 = sbr.rel (%p303) target = $region28
      $region27: #{resnext_bottleneck_forward.1} parent=11 // pred_region
        _
      $region28: #{resnext_bottleneck_forward.1} parent=11 // pred_fallthru
        _
      // Predicated region
      $region29: #{resnext_bottleneck_forward.1} parent=11 // pred_check
        %p306 = pneg %p148
      $region30: #{resnext_bottleneck_forward.1} parent=11 // pred_check_branch
        %308 = sbr.rel (%p306) target = $region32
      $region31: #{resnext_bottleneck_forward.1} parent=11 // pred_region
        _
      $region32: #{resnext_bottleneck_forward.1} parent=11 // pred_fallthru
        _
      // Predicated region
      $region33: #{resnext_bottleneck_forward.1} parent=11 // pred_check
        %p309 = pneg %p169
      $region34: #{resnext_bottleneck_forward.1} parent=11 // pred_check_branch
        %311 = sbr.rel (%p309) target = $region36
      $region35: #{resnext_bottleneck_forward.1} parent=11 // pred_region
        _
      $region36: #{resnext_bottleneck_forward.1} parent=11 // pred_fallthru
        _
      // Predicated region
      $region37: #{resnext_bottleneck_forward.1} parent=11 // pred_check
        %p312 = pneg %p190
      $region38: #{resnext_bottleneck_forward.1} parent=11 // pred_check_branch
        %314 = sbr.rel (%p312) target = $region40
      $region39: #{resnext_bottleneck_forward.1} parent=11 // pred_region
        _
      $region40: #{resnext_bottleneck_forward.1} parent=11 // pred_fallthru
        _
      // Predicated region
      $region41: #{resnext_bottleneck_forward.1} parent=11 // pred_check
        %p315 = pneg %p211
      $region42: #{resnext_bottleneck_forward.1} parent=11 // pred_check_branch
        %317 = sbr.rel (%p315) target = $region44
      $region43: #{resnext_bottleneck_forward.1} parent=11 // pred_region
        _
      $region44: #{resnext_bottleneck_forward.1} parent=11 // pred_fallthru
        _
      // Predicated region
      $region45: #{resnext_bottleneck_forward.1} parent=11 // pred_check
        %p318 = pneg %p232
      $region46: #{resnext_bottleneck_forward.1} parent=11 // pred_check_branch
        %320 = sbr.rel (%p318) target = $region48
      $region47: #{resnext_bottleneck_forward.1} parent=11 // pred_region
        _
      $region48: #{resnext_bottleneck_forward.1} parent=11 // pred_fallthru
        _
      // Predicated region
      $region49: #{resnext_bottleneck_forward.1} parent=11 // pred_check
        %p321 = pneg %p253
      $region50: #{resnext_bottleneck_forward.1} parent=11 // pred_check_branch
        %323 = sbr.rel (%p321) target = $region52
      $region51: #{resnext_bottleneck_forward.1} parent=11 // pred_region
        _
      $region52: #{resnext_bottleneck_forward.1} parent=11 // pred_fallthru
        _
    $region12: #{resnext_bottleneck_forward.1} parent=5 // pred_fallthru
      _
    %p324 = scmp.lt.s32.totalorder %s17, 2
    // Predicated region
    $region53: #{resnext_bottleneck_forward.1} parent=5 // pred_check
      %p325 = pneg %p324
    $region54: #{resnext_bottleneck_forward.1} parent=5 // pred_check_branch
      %327 = sbr.rel (%p325) target = $region56
    $region55: #{resnext_bottleneck_forward.1} parent=5 // pred_region
      // Predicated region
      $region57: #{resnext_bottleneck_forward.1} parent=55 // pred_check
        %p328 = pneg %p37
      $region58: #{resnext_bottleneck_forward.1} parent=55 // pred_check_branch
        %330 = sbr.rel (%p328) target = $region60
      $region59: #{resnext_bottleneck_forward.1} parent=55 // pred_region
        %p331 = scmp.lt.s32.totalorder %s17, 1
        %s332 = scalar_select %p331, %s17, 1
        %s333 = smul.addr %s332, 32
        %s334 = smul.addr %s333, 8
        %s335 = scalar_lea.vmem %s0, %s334
      $region60: #{resnext_bottleneck_forward.1} parent=55 // pred_fallthru
        _
    $region56: #{resnext_bottleneck_forward.1} parent=5 // pred_fallthru
      _
    %p336 = scmp.le.s32.totalorder 1, %s17
    %p337 = scmp.lt.s32.totalorder %s17, 3
    %p338 = pnand %p336, %p337
    %p339 = pneg %p338
    // Predicated region
    $region61: #{resnext_bottleneck_forward.1} parent=5 // pred_check
      _
    $region62: #{resnext_bottleneck_forward.1} parent=5 // pred_check_branch
      %341 = sbr.rel (%p338) target = $region64
    $region63: #{resnext_bottleneck_forward.1} parent=5 // pred_region
      %s342 = ssub.s32 %s17, 1
      %p343 = scmp.lt.s32.totalorder %s22, 1
      %s344 = scalar_select %p343, %s22, 1
      %s345 = smul.addr %s344, 32
      %s346 = smul.addr %s345, 8
      %s347 = scalar_lea.vmem %s0, %s346
      %p348 = pneg %p43
      %p349 = pneg %p40
      %p350 = pneg %p64
      %p351 = pneg %p61
      %p352 = pneg %p85
      %p353 = pneg %p82
      %p354 = pneg %p106
      %p355 = pneg %p103
      %p356 = pneg %p127
      %p357 = pneg %p124
      %p358 = pneg %p148
      %p359 = pneg %p145
      %p360 = pneg %p169
      %p361 = pneg %p166
      %p362 = pneg %p190
      %p363 = pneg %p187
      %p364 = pneg %p211
      %p365 = pneg %p208
      %p366 = pneg %p232
      %p367 = pneg %p229
      %p368 = pneg %p253
      %p369 = pneg %p250
      %p370 = pneg %p279
      %p371 = pneg %p276
      %p372 = scmp.lt.s32.totalorder %s22, 1
      %s373 = scalar_select %p372, %s22, 1
      %s374 = smul.addr %s373, 32
      %s375 = smul.addr %s374, 8
      %s376 = scalar_lea.vmem %s11, %s375
      %p377 = scmp.lt.s32.totalorder %s22, 1
      %s378 = scalar_select %p377, %s22, 1
      %s379 = smul.addr %s378, 32
      %s380 = smul.addr %s379, 8
      %s381 = scalar_lea.vmem %s0, %s380
      %p382 = scmp.lt.s32.totalorder %s22, 1
      %s383 = scalar_select %p382, %s22, 1
      %s384 = smul.addr %s383, 32
      %s385 = smul.addr %s384, 8
      %s386 = scalar_lea.vmem %s11, %s385
      %v387 = vld [vmem:[%s381] sm:$0xff]
      %v388 = vld [vmem:[%s381 + $0x8] sm:$0xff]
      %v389 = vld [vmem:[%s381 + $0x10] sm:$0xff]
      %v390 = vld [vmem:[%s381 + $0x18] sm:$0xff]
      %v391 = vld [vmem:[%s381 + $0x20] sm:$0xff]
      %v392 = vld [vmem:[%s381 + $0x28] sm:$0xff]
      %v393 = vld [vmem:[%s381 + $0x30] sm:$0xff]
      %v394 = vld [vmem:[%s381 + $0x38] sm:$0xff]
      %v395 = vld [vmem:[%s381 + $0x40] sm:$0xff]
      %v396 = vld [vmem:[%s381 + $0x48] sm:$0xff]
      %v397 = vld [vmem:[%s381 + $0x50] sm:$0xff]
      %v398 = vld [vmem:[%s381 + $0x58] sm:$0xff]
      %v399 = vld [vmem:[%s381 + $0x60] sm:$0xff]
      %v400 = vld [vmem:[%s381 + $0x68] sm:$0xff]
      %v401 = vld [vmem:[%s381 + $0x70] sm:$0xff]
      %v402 = vld [vmem:[%s381 + $0x78] sm:$0xff]
      %v403 = vld [vmem:[%s381 + $0x80] sm:$0xff]
      %v404 = vld [vmem:[%s381 + $0x88] sm:$0xff]
      %v405 = vld [vmem:[%s381 + $0x90] sm:$0xff]
      %v406 = vld [vmem:[%s381 + $0x98] sm:$0xff]
      %v407 = vld [vmem:[%s381 + $0xa0] sm:$0xff]
      %v408 = vld [vmem:[%s381 + $0xa8] sm:$0xff]
      %v409 = vld [vmem:[%s381 + $0xb0] sm:$0xff]
      %v410 = vld [vmem:[%s381 + $0xb8] sm:$0xff]
      %v411 = vld [vmem:[%s381 + $0xc0] sm:$0xff]
      %v412 = vld [vmem:[%s381 + $0xc8] sm:$0xff]
      %v413 = vld [vmem:[%s381 + $0xd0] sm:$0xff]
      %v414 = vld [vmem:[%s381 + $0xd8] sm:$0xff]
      %v415 = vld [vmem:[%s381 + $0xe0] sm:$0xff]
      %v416 = vld [vmem:[%s381 + $0xe8] sm:$0xff]
      %v417 = vld [vmem:[%s381 + $0xf0] sm:$0xff]
      %v418 = vld [vmem:[%s381 + $0xf8] sm:$0xff]
      %v419 = vld [vmem:[%s1] sm:$0xff]
      %420 = vmatprep.subr.mxu0 %v418
      %421 = vmatpush1.msra.mxu0 %v417
      %422 = vmatprep.subr.mxu0 %v416
      %423 = vmatpush1.msra.mxu0 %v415
      %424 = vmatprep.subr.mxu0 %v414
      %425 = vmatpush1.msra.mxu0 %v413
      %426 = vmatprep.subr.mxu0 %v412
      %427 = vmatpush1.msra.mxu0 %v411
      %428 = vmatprep.subr.mxu0 %v410
      %429 = vmatpush1.msra.mxu0 %v409
      %430 = vmatprep.subr.mxu0 %v408
      %431 = vmatpush1.msra.mxu0 %v407
      %432 = vmatprep.subr.mxu0 %v406
      %433 = vmatpush1.msra.mxu0 %v405
      %434 = vmatprep.subr.mxu0 %v404
      %435 = vmatpush1.msra.mxu0 %v403
      %436 = vmatprep.subr.mxu0 %v402
      %437 = vmatpush1.msra.mxu0 %v401
      %438 = vmatprep.subr.mxu0 %v400
      %439 = vmatpush1.msra.mxu0 %v399
      %440 = vmatprep.subr.mxu0 %v398
      %441 = vmatpush1.msra.mxu0 %v397
      %442 = vmatprep.subr.mxu0 %v396
      %443 = vmatpush1.msra.mxu0 %v395
      %444 = vmatprep.subr.mxu0 %v394
      %445 = vmatpush1.msra.mxu0 %v393
      %446 = vmatprep.subr.mxu0 %v392
      %447 = vmatpush1.msra.mxu0 %v391
      %448 = vmatprep.subr.mxu0 %v390
      %449 = vmatpush1.msra.mxu0 %v389
      %450 = vmatprep.subr.mxu0 %v388
      %451 = vmatpush1.msra.mxu0 %v387
      %452 = vmatprep.subr.mxu0 0.0
      %453 = vmatpush2.msra.mxu0 0.0
      %454 = vmatprep.subr.mxu0 0.0
      %455 = vmatpush2.msra.mxu0 0.0
      %456 = vmatprep.subr.mxu0 0.0
      %457 = vmatpush2.msra.mxu0 0.0
      %458 = vmatprep.subr.mxu0 0.0
      %459 = vmatpush2.msra.mxu0 0.0
      %460 = vmatprep.subr.mxu0 0.0
      %461 = vmatpush2.msra.mxu0 0.0
      %462 = vmatprep.subr.mxu0 0.0
      %463 = vmatpush2.msra.mxu0 0.0
      %464 = vmatprep.subr.mxu0 0.0
      %465 = vmatpush2.msra.mxu0 0.0
      %466 = vmatprep.subr.mxu0 0.0
      %467 = vmatpush2.msra.mxu0 0.0
      %468 = vmatprep.subr.mxu0 0.0
      %469 = vmatpush2.msra.mxu0 0.0
      %470 = vmatprep.subr.mxu0 0.0
      %471 = vmatpush2.msra.mxu0 0.0
      %472 = vmatprep.subr.mxu0 0.0
      %473 = vmatpush2.msra.mxu0 0.0
      %474 = vmatprep.subr.mxu0 0.0
      %475 = vmatpush2.msra.mxu0 0.0
      %476 = vmatprep.subr.mxu0 0.0
      %477 = vmatpush2.msra.mxu0 0.0
      %478 = vmatprep.subr.mxu0 0.0
      %479 = vmatpush2.msra.mxu0 0.0
      %480 = vmatprep.subr.mxu0 0.0
      %481 = vmatpush2.msra.mxu0 0.0
      %482 = vmatprep.subr.mxu0 0.0
      %483 = vmatpush2.msra.mxu0 0.0
      %484 = vmatprep.mubr.f32.mxu0 0.0
      %485 = vmatmul.mubr.f32.gmra.mxu0 %v419
      %v486 = vpop.f32.mrf.mxu0
      %v487 = vadd.f32 0.0, %v486
      %v488 = vpop.f32.mrf.mxu0
      %v489 = vadd.f32 0.0, %v488
      %490 = vdwg.mxu0
      %v491 = vld [vmem:[%s2] sm:$0xff]
      %493 = vset.pattern.permute.xlu0 0
      %494 = vperm.xlu0 %493, %v491
      %v495 = vpop.permute.xlu0 %494
      %v497 = vmul.f32 %v487, %v495
      %v498 = vmul.f32 %v489, %v495
      %v499 = vld [vmem:[%s3] sm:$0xff]
      %501 = vset.pattern.permute.xlu0 0
      %502 = vperm.xlu0 %501, %v499
      %v503 = vpop.permute.xlu0 %502
      %v505 = vadd.f32 %v497, %v503
      %v506 = vadd.f32 %v498, %v503
      %v507 = vmax.f32 %v505, 0.0
      %v508 = vmax.f32 %v506, 0.0
      %v509 = vld [vmem:[%s10] ss:$8 sm:$0x3]
      %v511 = vlaneseq
      %v512 = vshrl.u32 %v511, 7
      %v513 = vsub.s32 0, %v512
      %v514 = vrot.slane %v509, %v513
      %v515 = vlaneseq
      %v516 = vshrl.u32 %v515, 7
      %v517 = vsub.s32 1, %v516
      %v518 = vrot.slane %v509, %v517
      %519 = vrot.lane.b32.xlu0 %v514, 55
      %v520 = vpop.permute.xlu0 %519
      %521 = vrot.lane.b32.xlu0 %v518, 55
      %v522 = vpop.permute.xlu0 %521
      %vm523 = vcmask 449536
      %v524 = vsel %vm523, %v520, %v522
      %v528 = vmul.f32 %v508, %v520
      %v529 = vmul.f32 %v507, %v524
      %v530 = vmul.f32 %v508, %v522
      %534 = vrot.lane.b32.xlu0 %v528, 73
      %v535 = vpop.permute.xlu0 %534
      %536 = vrot.lane.b32.xlu0 %v529, 73
      %v537 = vpop.permute.xlu0 %536
      %538 = vrot.lane.b32.xlu0 %v530, 73
      %v539 = vpop.permute.xlu0 %538
      %vm540 = vcmask 596992
      %v541 = vsel %vm540, %v535, %v537
      %v542 = vsel %vm540, %v537, %v539
      %545 = vst [vmem:[#allocation2] sm:$0xff] %v541
      %546 = vst [vmem:[#allocation2 + $0x8] sm:$0xff] %v542
      %s547 = scalar_lea.vmem %s10, 1
      %v548 = vld [vmem:[%s547] ss:$8 sm:$0x3]
      %v550 = vlaneseq
      %v551 = vshrl.u32 %v550, 7
      %v552 = vsub.s32 0, %v551
      %v553 = vrot.slane %v548, %v552
      %v554 = vlaneseq
      %v555 = vshrl.u32 %v554, 7
      %v556 = vsub.s32 1, %v555
      %v557 = vrot.slane %v548, %v556
      %558 = vrot.lane.b32.xlu0 %v553, 56
      %v559 = vpop.permute.xlu0 %558
      %560 = vrot.lane.b32.xlu0 %v557, 56
      %v561 = vpop.permute.xlu0 %560
      %vm562 = vcmask 457728
      %v563 = vsel %vm562, %v559, %v561
      %v567 = vmul.f32 %v508, %v559
      %v568 = vmul.f32 %v507, %v563
      %v569 = vmul.f32 %v508, %v561
      %573 = vrot.lane.b32.xlu0 %v567, 72
      %v574 = vpop.permute.xlu0 %573
      %575 = vrot.lane.b32.xlu0 %v568, 72
      %v576 = vpop.permute.xlu0 %575
      %577 = vrot.lane.b32.xlu0 %v569, 72
      %v578 = vpop.permute.xlu0 %577
      %vm579 = vcmask 588800
      %v580 = vsel %vm579, %v574, %v576
      %v581 = vsel %vm579, %v576, %v578
      %584 = vst [vmem:[#allocation2 + $0x10] sm:$0xff] %v580
      %585 = vst [vmem:[#allocation2 + $0x18] sm:$0xff] %v581
      %s586 = scalar_lea.vmem %s10, 2
      %v587 = vld [vmem:[%s586] ss:$8 sm:$0x3]
      %v589 = vlaneseq
      %v590 = vshrl.u32 %v589, 7
      %v591 = vsub.s32 0, %v590
      %v592 = vrot.slane %v587, %v591
      %v593 = vlaneseq
      %v594 = vshrl.u32 %v593, 7
      %v595 = vsub.s32 1, %v594
      %v596 = vrot.slane %v587, %v595
      %597 = vrot.lane.b32.xlu0 %v592, 57
      %v598 = vpop.permute.xlu0 %597
      %599 = vrot.lane.b32.xlu0 %v596, 57
      %v600 = vpop.permute.xlu0 %599
      %vm601 = vcmask 465920
      %v602 = vsel %vm601, %v598, %v600
      %v606 = vmul.f32 %v508, %v598
      %v607 = vmul.f32 %v507, %v602
      %v608 = vmul.f32 %v508, %v600
      %612 = vrot.lane.b32.xlu0 %v606, 71
      %v613 = vpop.permute.xlu0 %612
      %614 = vrot.lane.b32.xlu0 %v607, 71
      %v615 = vpop.permute.xlu0 %614
      %616 = vrot.lane.b32.xlu0 %v608, 71
      %v617 = vpop.permute.xlu0 %616
      %vm618 = vcmask 580608
      %v619 = vsel %vm618, %v613, %v615
      %v620 = vsel %vm618, %v615, %v617
      %623 = vst [vmem:[#allocation2 + $0x20] sm:$0xff] %v619
      %624 = vst [vmem:[#allocation2 + $0x28] sm:$0xff] %v620
      %s625 = scalar_lea.vmem %s10, 3
      %v626 = vld [vmem:[%s625] ss:$8 sm:$0x3]
      %v628 = vlaneseq
      %v629 = vshrl.u32 %v628, 7
      %v630 = vsub.s32 0, %v629
      %v631 = vrot.slane %v626, %v630
      %v632 = vlaneseq
      %v633 = vshrl.u32 %v632, 7
      %v634 = vsub.s32 1, %v633
      %v635 = vrot.slane %v626, %v634
      %636 = vrot.lane.b32.xlu0 %v631, 63
      %v637 = vpop.permute.xlu0 %636
      %638 = vrot.lane.b32.xlu0 %v635, 63
      %v639 = vpop.permute.xlu0 %638
      %vm640 = vcmask 515072
      %v641 = vsel %vm640, %v637, %v639
      %v645 = vmul.f32 %v508, %v637
      %v646 = vmul.f32 %v507, %v641
      %v647 = vmul.f32 %v508, %v639
      %651 = vrot.lane.b32.xlu0 %v645, 65
      %v652 = vpop.permute.xlu0 %651
      %653 = vrot.lane.b32.xlu0 %v646, 65
      %v654 = vpop.permute.xlu0 %653
      %655 = vrot.lane.b32.xlu0 %v647, 65
      %v656 = vpop.permute.xlu0 %655
      %vm657 = vcmask 531456
      %v658 = vsel %vm657, %v652, %v654
      %v659 = vsel %vm657, %v654, %v656
      %662 = vst [vmem:[#allocation2 + $0x30] sm:$0xff] %v658
      %663 = vst [vmem:[#allocation2 + $0x38] sm:$0xff] %v659
      %s664 = scalar_lea.vmem %s10, 4
      %v665 = vld [vmem:[%s664] ss:$8 sm:$0x3]
      %v667 = vlaneseq
      %v668 = vshrl.u32 %v667, 7
      %v669 = vsub.s32 0, %v668
      %v670 = vrot.slane %v665, %v669
      %v671 = vlaneseq
      %v672 = vshrl.u32 %v671, 7
      %v673 = vsub.s32 1, %v672
      %v674 = vrot.slane %v665, %v673
      %675 = vrot.lane.b32.xlu0 %v670, 64
      %v676 = vpop.permute.xlu0 %675
      %677 = vrot.lane.b32.xlu0 %v674, 64
      %v678 = vpop.permute.xlu0 %677
      %vm679 = vcmask 523264
      %v680 = vsel %vm679, %v676, %v678
      %v684 = vmul.f32 %v508, %v676
      %v685 = vmul.f32 %v507, %v680
      %v686 = vmul.f32 %v508, %v678
      %690 = vrot.lane.b32.xlu0 %v684, 64
      %v691 = vpop.permute.xlu0 %690
      %692 = vrot.lane.b32.xlu0 %v685, 64
      %v693 = vpop.permute.xlu0 %692
      %694 = vrot.lane.b32.xlu0 %v686, 64
      %v695 = vpop.permute.xlu0 %694
      %v696 = vsel %vm679, %v691, %v693
      %v697 = vsel %vm679, %v693, %v695
      %700 = vst [vmem:[#allocation2 + $0x40] sm:$0xff] %v696
      %701 = vst [vmem:[#allocation2 + $0x48] sm:$0xff] %v697
      %s702 = scalar_lea.vmem %s10, 5
      %v703 = vld [vmem:[%s702] ss:$8 sm:$0x3]
      %v705 = vlaneseq
      %v706 = vshrl.u32 %v705, 7
      %v707 = vsub.s32 0, %v706
      %v708 = vrot.slane %v703, %v707
      %v709 = vlaneseq
      %v710 = vshrl.u32 %v709, 7
      %v711 = vsub.s32 1, %v710
      %v712 = vrot.slane %v703, %v711
      %713 = vrot.lane.b32.xlu0 %v708, 65
      %v714 = vpop.permute.xlu0 %713
      %715 = vrot.lane.b32.xlu0 %v712, 65
      %v716 = vpop.permute.xlu0 %715
      %v717 = vsel %vm657, %v714, %v716
      %v721 = vmul.f32 %v508, %v714
      %v722 = vmul.f32 %v507, %v717
      %v723 = vmul.f32 %v508, %v716
      %727 = vrot.lane.b32.xlu0 %v721, 63
      %v728 = vpop.permute.xlu0 %727
      %729 = vrot.lane.b32.xlu0 %v722, 63
      %v730 = vpop.permute.xlu0 %729
      %731 = vrot.lane.b32.xlu0 %v723, 63
      %v732 = vpop.permute.xlu0 %731
      %v733 = vsel %vm640, %v728, %v730
      %v734 = vsel %vm640, %v730, %v732
      %737 = vst [vmem:[#allocation2 + $0x50] sm:$0xff] %v733
      %738 = vst [vmem:[#allocation2 + $0x58] sm:$0xff] %v734
      %s739 = scalar_lea.vmem %s10, 6
      %v740 = vld [vmem:[%s739] ss:$8 sm:$0x3]
      %v742 = vlaneseq
      %v743 = vshrl.u32 %v742, 7
      %v744 = vsub.s32 0, %v743
      %v745 = vrot.slane %v740, %v744
      %v746 = vlaneseq
      %v747 = vshrl.u32 %v746, 7
      %v748 = vsub.s32 1, %v747
      %v749 = vrot.slane %v740, %v748
      %750 = vrot.lane.b32.xlu0 %v745, 71
      %v751 = vpop.permute.xlu0 %750
      %752 = vrot.lane.b32.xlu0 %v749, 71
      %v753 = vpop.permute.xlu0 %752
      %v754 = vsel %vm618, %v751, %v753
      %v758 = vmul.f32 %v508, %v751
      %v759 = vmul.f32 %v507, %v754
      %v760 = vmul.f32 %v508, %v753
      %764 = vrot.lane.b32.xlu0 %v758, 57
      %v765 = vpop.permute.xlu0 %764
      %766 = vrot.lane.b32.xlu0 %v759, 57
      %v767 = vpop.permute.xlu0 %766
      %768 = vrot.lane.b32.xlu0 %v760, 57
      %v769 = vpop.permute.xlu0 %768
      %v770 = vsel %vm601, %v765, %v767
      %v771 = vsel %vm601, %v767, %v769
      %774 = vst [vmem:[#allocation2 + $0x60] sm:$0xff] %v770
      %775 = vst [vmem:[#allocation2 + $0x68] sm:$0xff] %v771
      %s776 = scalar_lea.vmem %s10, 7
      %v777 = vld [vmem:[%s776] ss:$8 sm:$0x3]
      %v779 = vlaneseq
      %v780 = vshrl.u32 %v779, 7
      %v781 = vsub.s32 0, %v780
      %v782 = vrot.slane %v777, %v781
      %v783 = vlaneseq
      %v784 = vshrl.u32 %v783, 7
      %v785 = vsub.s32 1, %v784
      %v786 = vrot.slane %v777, %v785
      %787 = vrot.lane.b32.xlu0 %v782, 72
      %v788 = vpop.permute.xlu0 %787
      %789 = vrot.lane.b32.xlu0 %v786, 72
      %v790 = vpop.permute.xlu0 %789
      %v791 = vsel %vm579, %v788, %v790
      %v795 = vmul.f32 %v508, %v788
      %v796 = vmul.f32 %v507, %v791
      %v797 = vmul.f32 %v508, %v790
      %801 = vrot.lane.b32.xlu0 %v795, 56
      %v802 = vpop.permute.xlu0 %801
      %803 = vrot.lane.b32.xlu0 %v796, 56
      %v804 = vpop.permute.xlu0 %803
      %805 = vrot.lane.b32.xlu0 %v797, 56
      %v806 = vpop.permute.xlu0 %805
      %v807 = vsel %vm562, %v802, %v804
      %v808 = vsel %vm562, %v804, %v806
      %811 = vst [vmem:[#allocation2 + $0x70] sm:$0xff] %v807
      %812 = vst [vmem:[#allocation2 + $0x78] sm:$0xff] %v808
      %s813 = scalar_lea.vmem %s10, 16
      %v814 = vld [vmem:[%s813] ss:$8 sm:$0x3]
      %v816 = vlaneseq
      %v817 = vshrl.u32 %v816, 7
      %v818 = vsub.s32 0, %v817
      %v819 = vrot.slane %v814, %v818
      %v820 = vlaneseq
      %v821 = vshrl.u32 %v820, 7
      %v822 = vsub.s32 1, %v821
      %v823 = vrot.slane %v814, %v822
      %824 = vrot.lane.b32.xlu0 %v819, 73
      %v825 = vpop.permute.xlu0 %824
      %826 = vrot.lane.b32.xlu0 %v823, 73
      %v827 = vpop.permute.xlu0 %826
      %v828 = vsel %vm540, %v825, %v827
      %v832 = vmul.f32 %v508, %v825
      %v833 = vmul.f32 %v507, %v828
      %v834 = vmul.f32 %v508, %v827
      %838 = vrot.lane.b32.xlu0 %v832, 55
      %v839 = vpop.permute.xlu0 %838
      %840 = vrot.lane.b32.xlu0 %v833, 55
      %v841 = vpop.permute.xlu0 %840
      %842 = vrot.lane.b32.xlu0 %v834, 55
      %v843 = vpop.permute.xlu0 %842
      %v844 = vsel %vm523, %v839, %v841
      %v845 = vsel %vm523, %v841, %v843
      %848 = vst [vmem:[#allocation2 + $0x80] sm:$0xff] %v844
      %849 = vst [vmem:[#allocation2 + $0x88] sm:$0xff] %v845
      %s850 = scalar_lea.vmem %s10, 17
      %v851 = vld [vmem:[%s850] ss:$8 sm:$0x3]
      %v853 = vlaneseq
      %v854 = vshrl.u32 %v853, 7
      %v855 = vsub.s32 0, %v854
      %v856 = vrot.slane %v851, %v855
      %v857 = vlaneseq
      %v858 = vshrl.u32 %v857, 7
      %v859 = vsub.s32 1, %v858
      %v860 = vrot.slane %v851, %v859
      %861 = vrot.lane.b32.xlu0 %v856, 119
      %v862 = vpop.permute.xlu0 %861
      %863 = vrot.lane.b32.xlu0 %v860, 119
      %v864 = vpop.permute.xlu0 %863
      %vm865 = vcmask 973824
      %v866 = vsel %vm865, %v862, %v864
      %v870 = vmul.f32 %v508, %v862
      %v871 = vmul.f32 %v507, %v866
      %v872 = vmul.f32 %v508, %v864
      %876 = vrot.lane.b32.xlu0 %v870, 9
      %v877 = vpop.permute.xlu0 %876
      %878 = vrot.lane.b32.xlu0 %v871, 9
      %v879 = vpop.permute.xlu0 %878
      %880 = vrot.lane.b32.xlu0 %v872, 9
      %v881 = vpop.permute.xlu0 %880
      %vm882 = vcmask 72704
      %v883 = vsel %vm882, %v877, %v879
      %v884 = vsel %vm882, %v879, %v881
      %887 = vst [vmem:[#allocation2 + $0x90] sm:$0xff] %v883
      %888 = vst [vmem:[#allocation2 + $0x98] sm:$0xff] %v884
      %s889 = scalar_lea.vmem %s10, 18
      %v890 = vld [vmem:[%s889] ss:$8 sm:$0x3]
      %v892 = vlaneseq
      %v893 = vshrl.u32 %v892, 7
      %v894 = vsub.s32 0, %v893
      %v895 = vrot.slane %v890, %v894
      %v896 = vlaneseq
      %v897 = vshrl.u32 %v896, 7
      %v898 = vsub.s32 1, %v897
      %v899 = vrot.slane %v890, %v898
      %900 = vrot.lane.b32.xlu0 %v895, 120
      %v901 = vpop.permute.xlu0 %900
      %902 = vrot.lane.b32.xlu0 %v899, 120
      %v903 = vpop.permute.xlu0 %902
      %vm904 = vcmask 982016
      %v905 = vsel %vm904, %v901, %v903
      %v909 = vmul.f32 %v508, %v901
      %v910 = vmul.f32 %v507, %v905
      %v911 = vmul.f32 %v508, %v903
      %915 = vrot.lane.b32.xlu0 %v909, 8
      %v916 = vpop.permute.xlu0 %915
      %917 = vrot.lane.b32.xlu0 %v910, 8
      %v918 = vpop.permute.xlu0 %917
      %919 = vrot.lane.b32.xlu0 %v911, 8
      %v920 = vpop.permute.xlu0 %919
      %vm921 = vcmask 64512
      %v922 = vsel %vm921, %v916, %v918
      %v923 = vsel %vm921, %v918, %v920
      %926 = vst [vmem:[#allocation2 + $0xa0] sm:$0xff] %v922
      %927 = vst [vmem:[#allocation2 + $0xa8] sm:$0xff] %v923
      %s928 = scalar_lea.vmem %s10, 19
      %v929 = vld [vmem:[%s928] ss:$8 sm:$0x3]
      %v931 = vlaneseq
      %v932 = vshrl.u32 %v931, 7
      %v933 = vsub.s32 0, %v932
      %v934 = vrot.slane %v929, %v933
      %v935 = vlaneseq
      %v936 = vshrl.u32 %v935, 7
      %v937 = vsub.s32 1, %v936
      %v938 = vrot.slane %v929, %v937
      %939 = vrot.lane.b32.xlu0 %v934, 121
      %v940 = vpop.permute.xlu0 %939
      %941 = vrot.lane.b32.xlu0 %v938, 121
      %v942 = vpop.permute.xlu0 %941
      %vm943 = vcmask 990208
      %v944 = vsel %vm943, %v940, %v942
      %v948 = vmul.f32 %v508, %v940
      %v949 = vmul.f32 %v507, %v944
      %v950 = vmul.f32 %v508, %v942
      %954 = vrot.lane.b32.xlu0 %v948, 7
      %v955 = vpop.permute.xlu0 %954
      %956 = vrot.lane.b32.xlu0 %v949, 7
      %v957 = vpop.permute.xlu0 %956
      %958 = vrot.lane.b32.xlu0 %v950, 7
      %v959 = vpop.permute.xlu0 %958
      %vm960 = vcmask 56320
      %v961 = vsel %vm960, %v955, %v957
      %v962 = vsel %vm960, %v957, %v959
      %965 = vst [vmem:[#allocation2 + $0xb0] sm:$0xff] %v961
      %966 = vst [vmem:[#allocation2 + $0xb8] sm:$0xff] %v962
      %s967 = scalar_lea.vmem %s10, 20
      %v968 = vld [vmem:[%s967] ss:$8 sm:$0x3]
      %v970 = vlaneseq
      %v971 = vshrl.u32 %v970, 7
      %v972 = vsub.s32 0, %v971
      %v973 = vrot.slane %v968, %v972
      %v974 = vlaneseq
      %v975 = vshrl.u32 %v974, 7
      %v976 = vsub.s32 1, %v975
      %v977 = vrot.slane %v968, %v976
      %978 = vrot.lane.b32.xlu0 %v973, 127
      %v979 = vpop.permute.xlu0 %978
      %980 = vrot.lane.b32.xlu0 %v977, 127
      %v981 = vpop.permute.xlu0 %980
      %vm982 = vcmask 1039360
      %v983 = vsel %vm982, %v979, %v981
      %v987 = vmul.f32 %v508, %v979
      %v988 = vmul.f32 %v507, %v983
      %v989 = vmul.f32 %v508, %v981
      %993 = vrot.lane.b32.xlu0 %v987, 1
      %v994 = vpop.permute.xlu0 %993
      %995 = vrot.lane.b32.xlu0 %v988, 1
      %v996 = vpop.permute.xlu0 %995
      %997 = vrot.lane.b32.xlu0 %v989, 1
      %v998 = vpop.permute.xlu0 %997
      %vm999 = vcmask 7168
      %v1000 = vsel %vm999, %v994, %v996
      %v1001 = vsel %vm999, %v996, %v998
      %1004 = vst [vmem:[#allocation2 + $0xc0] sm:$0xff] %v1000
      %1005 = vst [vmem:[#allocation2 + $0xc8] sm:$0xff] %v1001
      %s1006 = scalar_lea.vmem %s10, 21
      %v1007 = vld [vmem:[%s1006] ss:$8 sm:$0x3]
      %v1009 = vlaneseq
      %v1010 = vshrl.u32 %v1009, 7
      %v1011 = vsub.s32 0, %v1010
      %v1012 = vrot.slane %v1007, %v1011
      %v1013 = vlaneseq
      %v1014 = vshrl.u32 %v1013, 7
      %v1015 = vsub.s32 1, %v1014
      %v1016 = vrot.slane %v1007, %v1015
      %v1019 = vmul.f32 %v507, %v1012
      %v1020 = vmul.f32 %v508, %v1016
      %1021 = vst [vmem:[#allocation2 + $0xd0] sm:$0xff] %v1019
      %1022 = vst [vmem:[#allocation2 + $0xd8] sm:$0xff] %v1020
      %s1023 = scalar_lea.vmem %s10, 22
      %v1024 = vld [vmem:[%s1023] ss:$8 sm:$0x3]
      %v1026 = vlaneseq
      %v1027 = vshrl.u32 %v1026, 7
      %v1028 = vsub.s32 0, %v1027
      %v1029 = vrot.slane %v1024, %v1028
      %v1030 = vlaneseq
      %v1031 = vshrl.u32 %v1030, 7
      %v1032 = vsub.s32 1, %v1031
      %v1033 = vrot.slane %v1024, %v1032
      %1034 = vrot.lane.b32.xlu0 %v1029, 1
      %v1035 = vpop.permute.xlu0 %1034
      %1036 = vrot.lane.b32.xlu0 %v1033, 1
      %v1037 = vpop.permute.xlu0 %1036
      %v1038 = vsel %vm999, %v1035, %v1037
      %v1042 = vmul.f32 %v507, %v1035
      %v1043 = vmul.f32 %v508, %v1038
      %v1044 = vmul.f32 %v507, %v1037
      %1048 = vrot.lane.b32.xlu0 %v1042, 127
      %v1049 = vpop.permute.xlu0 %1048
      %1050 = vrot.lane.b32.xlu0 %v1043, 127
      %v1051 = vpop.permute.xlu0 %1050
      %1052 = vrot.lane.b32.xlu0 %v1044, 127
      %v1053 = vpop.permute.xlu0 %1052
      %v1054 = vsel %vm982, %v1049, %v1051
      %v1055 = vsel %vm982, %v1051, %v1053
      %1058 = vst [vmem:[#allocation2 + $0xe0] sm:$0xff] %v1054
      %1059 = vst [vmem:[#allocation2 + $0xe8] sm:$0xff] %v1055
      %s1060 = scalar_lea.vmem %s10, 23
      %v1061 = vld [vmem:[%s1060] ss:$8 sm:$0x3]
      %v1063 = vlaneseq
      %v1064 = vshrl.u32 %v1063, 7
      %v1065 = vsub.s32 0, %v1064
      %v1066 = vrot.slane %v1061, %v1065
      %v1067 = vlaneseq
      %v1068 = vshrl.u32 %v1067, 7
      %v1069 = vsub.s32 1, %v1068
      %v1070 = vrot.slane %v1061, %v1069
      %1071 = vrot.lane.b32.xlu0 %v1066, 7
      %v1072 = vpop.permute.xlu0 %1071
      %1073 = vrot.lane.b32.xlu0 %v1070, 7
      %v1074 = vpop.permute.xlu0 %1073
      %v1075 = vsel %vm960, %v1072, %v1074
      %v1079 = vmul.f32 %v507, %v1072
      %v1080 = vmul.f32 %v508, %v1075
      %v1081 = vmul.f32 %v507, %v1074
      %1085 = vrot.lane.b32.xlu0 %v1079, 121
      %v1086 = vpop.permute.xlu0 %1085
      %1087 = vrot.lane.b32.xlu0 %v1080, 121
      %v1088 = vpop.permute.xlu0 %1087
      %1089 = vrot.lane.b32.xlu0 %v1081, 121
      %v1090 = vpop.permute.xlu0 %1089
      %v1091 = vsel %vm943, %v1086, %v1088
      %v1092 = vsel %vm943, %v1088, %v1090
      %1095 = vst [vmem:[#allocation2 + $0xf0] sm:$0xff] %v1091
      %1096 = vst [vmem:[#allocation2 + $0xf8] sm:$0xff] %v1092
      %s1097 = scalar_lea.vmem %s10, 32
      %v1098 = vld [vmem:[%s1097] ss:$8 sm:$0x3]
      %v1100 = vlaneseq
      %v1101 = vshrl.u32 %v1100, 7
      %v1102 = vsub.s32 0, %v1101
      %v1103 = vrot.slane %v1098, %v1102
      %v1104 = vlaneseq
      %v1105 = vshrl.u32 %v1104, 7
      %v1106 = vsub.s32 1, %v1105
      %v1107 = vrot.slane %v1098, %v1106
      %1108 = vrot.lane.b32.xlu0 %v1103, 8
      %v1109 = vpop.permute.xlu0 %1108
      %1110 = vrot.lane.b32.xlu0 %v1107, 8
      %v1111 = vpop.permute.xlu0 %1110
      %v1112 = vsel %vm921, %v1109, %v1111
      %v1116 = vmul.f32 %v507, %v1109
      %v1117 = vmul.f32 %v508, %v1112
      %v1118 = vmul.f32 %v507, %v1111
      %1122 = vrot.lane.b32.xlu0 %v1116, 120
      %v1123 = vpop.permute.xlu0 %1122
      %1124 = vrot.lane.b32.xlu0 %v1117, 120
      %v1125 = vpop.permute.xlu0 %1124
      %1126 = vrot.lane.b32.xlu0 %v1118, 120
      %v1127 = vpop.permute.xlu0 %1126
      %v1128 = vsel %vm904, %v1123, %v1125
      %v1129 = vsel %vm904, %v1125, %v1127
      %1132 = vst [vmem:[#allocation2 + $0x100] sm:$0xff] %v1128
      %1133 = vst [vmem:[#allocation2 + $0x108] sm:$0xff] %v1129
      %s1134 = scalar_lea.vmem %s10, 33
      %v1135 = vld [vmem:[%s1134] ss:$8 sm:$0x3]
      %v1137 = vlaneseq
      %v1138 = vshrl.u32 %v1137, 7
      %v1139 = vsub.s32 0, %v1138
      %v1140 = vrot.slane %v1135, %v1139
      %v1141 = vlaneseq
      %v1142 = vshrl.u32 %v1141, 7
      %v1143 = vsub.s32 1, %v1142
      %v1144 = vrot.slane %v1135, %v1143
      %1145 = vrot.lane.b32.xlu0 %v1140, 9
      %v1146 = vpop.permute.xlu0 %1145
      %1147 = vrot.lane.b32.xlu0 %v1144, 9
      %v1148 = vpop.permute.xlu0 %1147
      %v1149 = vsel %vm882, %v1146, %v1148
      %v1153 = vmul.f32 %v507, %v1146
      %v1154 = vmul.f32 %v508, %v1149
      %v1155 = vmul.f32 %v507, %v1148
      %1159 = vrot.lane.b32.xlu0 %v1153, 119
      %v1160 = vpop.permute.xlu0 %1159
      %1161 = vrot.lane.b32.xlu0 %v1154, 119
      %v1162 = vpop.permute.xlu0 %1161
      %1163 = vrot.lane.b32.xlu0 %v1155, 119
      %v1164 = vpop.permute.xlu0 %1163
      %v1165 = vsel %vm865, %v1160, %v1162
      %v1166 = vsel %vm865, %v1162, %v1164
      %1169 = vst [vmem:[#allocation2 + $0x110] sm:$0xff] %v1165
      %1170 = vst [vmem:[#allocation2 + $0x118] sm:$0xff] %v1166
      %s1171 = scalar_lea.vmem %s10, 34
      %v1172 = vld [vmem:[%s1171] ss:$8 sm:$0x3]
      %v1174 = vlaneseq
      %v1175 = vshrl.u32 %v1174, 7
      %v1176 = vsub.s32 0, %v1175
      %v1177 = vrot.slane %v1172, %v1176
      %v1178 = vlaneseq
      %v1179 = vshrl.u32 %v1178, 7
      %v1180 = vsub.s32 1, %v1179
      %v1181 = vrot.slane %v1172, %v1180
      %1182 = vrot.lane.b32.xlu0 %v1177, 55
      %v1183 = vpop.permute.xlu0 %1182
      %1184 = vrot.lane.b32.xlu0 %v1181, 55
      %v1185 = vpop.permute.xlu0 %1184
      %v1186 = vsel %vm523, %v1183, %v1185
      %v1190 = vmul.f32 %v507, %v1183
      %v1191 = vmul.f32 %v508, %v1186
      %v1192 = vmul.f32 %v507, %v1185
      %1196 = vrot.lane.b32.xlu0 %v1190, 73
      %v1197 = vpop.permute.xlu0 %1196
      %1198 = vrot.lane.b32.xlu0 %v1191, 73
      %v1199 = vpop.permute.xlu0 %1198
      %1200 = vrot.lane.b32.xlu0 %v1192, 73
      %v1201 = vpop.permute.xlu0 %1200
      %v1202 = vsel %vm540, %v1197, %v1199
      %v1203 = vsel %vm540, %v1199, %v1201
      %1206 = vst [vmem:[#allocation2 + $0x120] sm:$0xff] %v1202
      %1207 = vst [vmem:[#allocation2 + $0x128] sm:$0xff] %v1203
      %s1208 = scalar_lea.vmem %s10, 35
      %v1209 = vld [vmem:[%s1208] ss:$8 sm:$0x3]
      %v1211 = vlaneseq
      %v1212 = vshrl.u32 %v1211, 7
      %v1213 = vsub.s32 0, %v1212
      %v1214 = vrot.slane %v1209, %v1213
      %v1215 = vlaneseq
      %v1216 = vshrl.u32 %v1215, 7
      %v1217 = vsub.s32 1, %v1216
      %v1218 = vrot.slane %v1209, %v1217
      %1219 = vrot.lane.b32.xlu0 %v1214, 56
      %v1220 = vpop.permute.xlu0 %1219
      %1221 = vrot.lane.b32.xlu0 %v1218, 56
      %v1222 = vpop.permute.xlu0 %1221
      %v1223 = vsel %vm562, %v1220, %v1222
      %v1227 = vmul.f32 %v507, %v1220
      %v1228 = vmul.f32 %v508, %v1223
      %v1229 = vmul.f32 %v507, %v1222
      %1233 = vrot.lane.b32.xlu0 %v1227, 72
      %v1234 = vpop.permute.xlu0 %1233
      %1235 = vrot.lane.b32.xlu0 %v1228, 72
      %v1236 = vpop.permute.xlu0 %1235
      %1237 = vrot.lane.b32.xlu0 %v1229, 72
      %v1238 = vpop.permute.xlu0 %1237
      %v1239 = vsel %vm579, %v1234, %v1236
      %v1240 = vsel %vm579, %v1236, %v1238
      %1243 = vst [vmem:[#allocation2 + $0x130] sm:$0xff] %v1239
      %1244 = vst [vmem:[#allocation2 + $0x138] sm:$0xff] %v1240
      %s1245 = scalar_lea.vmem %s10, 36
      %v1246 = vld [vmem:[%s1245] ss:$8 sm:$0x3]
      %v1248 = vlaneseq
      %v1249 = vshrl.u32 %v1248, 7
      %v1250 = vsub.s32 0, %v1249
      %v1251 = vrot.slane %v1246, %v1250
      %v1252 = vlaneseq
      %v1253 = vshrl.u32 %v1252, 7
      %v1254 = vsub.s32 1, %v1253
      %v1255 = vrot.slane %v1246, %v1254
      %1256 = vrot.lane.b32.xlu0 %v1251, 57
      %v1257 = vpop.permute.xlu0 %1256
      %1258 = vrot.lane.b32.xlu0 %v1255, 57
      %v1259 = vpop.permute.xlu0 %1258
      %v1260 = vsel %vm601, %v1257, %v1259
      %v1264 = vmul.f32 %v507, %v1257
      %v1265 = vmul.f32 %v508, %v1260
      %v1266 = vmul.f32 %v507, %v1259
      %1270 = vrot.lane.b32.xlu0 %v1264, 71
      %v1271 = vpop.permute.xlu0 %1270
      %1272 = vrot.lane.b32.xlu0 %v1265, 71
      %v1273 = vpop.permute.xlu0 %1272
      %1274 = vrot.lane.b32.xlu0 %v1266, 71
      %v1275 = vpop.permute.xlu0 %1274
      %v1276 = vsel %vm618, %v1271, %v1273
      %v1277 = vsel %vm618, %v1273, %v1275
      %1280 = vst [vmem:[#allocation2 + $0x140] sm:$0xff] %v1276
      %1281 = vst [vmem:[#allocation2 + $0x148] sm:$0xff] %v1277
      %s1282 = scalar_lea.vmem %s10, 37
      %v1283 = vld [vmem:[%s1282] ss:$8 sm:$0x3]
      %v1285 = vlaneseq
      %v1286 = vshrl.u32 %v1285, 7
      %v1287 = vsub.s32 0, %v1286
      %v1288 = vrot.slane %v1283, %v1287
      %v1289 = vlaneseq
      %v1290 = vshrl.u32 %v1289, 7
      %v1291 = vsub.s32 1, %v1290
      %v1292 = vrot.slane %v1283, %v1291
      %1293 = vrot.lane.b32.xlu0 %v1288, 63
      %v1294 = vpop.permute.xlu0 %1293
      %1295 = vrot.lane.b32.xlu0 %v1292, 63
      %v1296 = vpop.permute.xlu0 %1295
      %v1297 = vsel %vm640, %v1294, %v1296
      %v1301 = vmul.f32 %v507, %v1294
      %v1302 = vmul.f32 %v508, %v1297
      %v1303 = vmul.f32 %v507, %v1296
      %1307 = vrot.lane.b32.xlu0 %v1301, 65
      %v1308 = vpop.permute.xlu0 %1307
      %1309 = vrot.lane.b32.xlu0 %v1302, 65
      %v1310 = vpop.permute.xlu0 %1309
      %1311 = vrot.lane.b32.xlu0 %v1303, 65
      %v1312 = vpop.permute.xlu0 %1311
      %v1313 = vsel %vm657, %v1308, %v1310
      %v1314 = vsel %vm657, %v1310, %v1312
      %1317 = vst [vmem:[#allocation2 + $0x150] sm:$0xff] %v1313
      %1318 = vst [vmem:[#allocation2 + $0x158] sm:$0xff] %v1314
      %s1319 = scalar_lea.vmem %s10, 38
      %v1320 = vld [vmem:[%s1319] ss:$8 sm:$0x3]
      %v1322 = vlaneseq
      %v1323 = vshrl.u32 %v1322, 7
      %v1324 = vsub.s32 0, %v1323
      %v1325 = vrot.slane %v1320, %v1324
      %v1326 = vlaneseq
      %v1327 = vshrl.u32 %v1326, 7
      %v1328 = vsub.s32 1, %v1327
      %v1329 = vrot.slane %v1320, %v1328
      %1330 = vrot.lane.b32.xlu0 %v1325, 64
      %v1331 = vpop.permute.xlu0 %1330
      %1332 = vrot.lane.b32.xlu0 %v1329, 64
      %v1333 = vpop.permute.xlu0 %1332
      %v1334 = vsel %vm679, %v1331, %v1333
      %v1338 = vmul.f32 %v507, %v1331
      %v1339 = vmul.f32 %v508, %v1334
      %v1340 = vmul.f32 %v507, %v1333
      %1344 = vrot.lane.b32.xlu0 %v1338, 64
      %v1345 = vpop.permute.xlu0 %1344
      %1346 = vrot.lane.b32.xlu0 %v1339, 64
      %v1347 = vpop.permute.xlu0 %1346
      %1348 = vrot.lane.b32.xlu0 %v1340, 64
      %v1349 = vpop.permute.xlu0 %1348
      %v1350 = vsel %vm679, %v1345, %v1347
      %v1351 = vsel %vm679, %v1347, %v1349
      %1354 = vst [vmem:[#allocation2 + $0x160] sm:$0xff] %v1350
      %1355 = vst [vmem:[#allocation2 + $0x168] sm:$0xff] %v1351
      %s1356 = scalar_lea.vmem %s10, 39
      %v1357 = vld [vmem:[%s1356] ss:$8 sm:$0x3]
      %v1359 = vlaneseq
      %v1360 = vshrl.u32 %v1359, 7
      %v1361 = vsub.s32 0, %v1360
      %v1362 = vrot.slane %v1357, %v1361
      %v1363 = vlaneseq
      %v1364 = vshrl.u32 %v1363, 7
      %v1365 = vsub.s32 1, %v1364
      %v1366 = vrot.slane %v1357, %v1365
      %1367 = vrot.lane.b32.xlu0 %v1362, 65
      %v1368 = vpop.permute.xlu0 %1367
      %1369 = vrot.lane.b32.xlu0 %v1366, 65
      %v1370 = vpop.permute.xlu0 %1369
      %v1371 = vsel %vm657, %v1368, %v1370
      %v1375 = vmul.f32 %v507, %v1368
      %v1376 = vmul.f32 %v508, %v1371
      %v1377 = vmul.f32 %v507, %v1370
      %1381 = vrot.lane.b32.xlu0 %v1375, 63
      %v1382 = vpop.permute.xlu0 %1381
      %1383 = vrot.lane.b32.xlu0 %v1376, 63
      %v1384 = vpop.permute.xlu0 %1383
      %1385 = vrot.lane.b32.xlu0 %v1377, 63
      %v1386 = vpop.permute.xlu0 %1385
      %v1387 = vsel %vm640, %v1382, %v1384
      %v1388 = vsel %vm640, %v1384, %v1386
      %1391 = vst [vmem:[#allocation2 + $0x170] sm:$0xff] %v1387
      %1392 = vst [vmem:[#allocation2 + $0x178] sm:$0xff] %v1388
      %s1393 = scalar_lea.vmem %s10, 48
      %v1394 = vld [vmem:[%s1393] ss:$8 sm:$0x3]
      %v1396 = vlaneseq
      %v1397 = vshrl.u32 %v1396, 7
      %v1398 = vsub.s32 0, %v1397
      %v1399 = vrot.slane %v1394, %v1398
      %v1400 = vlaneseq
      %v1401 = vshrl.u32 %v1400, 7
      %v1402 = vsub.s32 1, %v1401
      %v1403 = vrot.slane %v1394, %v1402
      %1404 = vrot.lane.b32.xlu0 %v1399, 71
      %v1405 = vpop.permute.xlu0 %1404
      %1406 = vrot.lane.b32.xlu0 %v1403, 71
      %v1407 = vpop.permute.xlu0 %1406
      %v1408 = vsel %vm618, %v1405, %v1407
      %v1412 = vmul.f32 %v507, %v1405
      %v1413 = vmul.f32 %v508, %v1408
      %v1414 = vmul.f32 %v507, %v1407
      %1418 = vrot.lane.b32.xlu0 %v1412, 57
      %v1419 = vpop.permute.xlu0 %1418
      %1420 = vrot.lane.b32.xlu0 %v1413, 57
      %v1421 = vpop.permute.xlu0 %1420
      %1422 = vrot.lane.b32.xlu0 %v1414, 57
      %v1423 = vpop.permute.xlu0 %1422
      %v1424 = vsel %vm601, %v1419, %v1421
      %v1425 = vsel %vm601, %v1421, %v1423
      %1428 = vst [vmem:[#allocation2 + $0x180] sm:$0xff] %v1424
      %1429 = vst [vmem:[#allocation2 + $0x188] sm:$0xff] %v1425
      %s1430 = scalar_lea.vmem %s10, 49
      %v1431 = vld [vmem:[%s1430] ss:$8 sm:$0x3]
      %v1433 = vlaneseq
      %v1434 = vshrl.u32 %v1433, 7
      %v1435 = vsub.s32 0, %v1434
      %v1436 = vrot.slane %v1431, %v1435
      %v1437 = vlaneseq
      %v1438 = vshrl.u32 %v1437, 7
      %v1439 = vsub.s32 1, %v1438
      %v1440 = vrot.slane %v1431, %v1439
      %1441 = vrot.lane.b32.xlu0 %v1436, 72
      %v1442 = vpop.permute.xlu0 %1441
      %1443 = vrot.lane.b32.xlu0 %v1440, 72
      %v1444 = vpop.permute.xlu0 %1443
      %v1445 = vsel %vm579, %v1442, %v1444
      %v1449 = vmul.f32 %v507, %v1442
      %v1450 = vmul.f32 %v508, %v1445
      %v1451 = vmul.f32 %v507, %v1444
      %1455 = vrot.lane.b32.xlu0 %v1449, 56
      %v1456 = vpop.permute.xlu0 %1455
      %1457 = vrot.lane.b32.xlu0 %v1450, 56
      %v1458 = vpop.permute.xlu0 %1457
      %1459 = vrot.lane.b32.xlu0 %v1451, 56
      %v1460 = vpop.permute.xlu0 %1459
      %v1461 = vsel %vm562, %v1456, %v1458
      %v1462 = vsel %vm562, %v1458, %v1460
      %1465 = vst [vmem:[#allocation2 + $0x190] sm:$0xff] %v1461
      %1466 = vst [vmem:[#allocation2 + $0x198] sm:$0xff] %v1462
      %s1467 = scalar_lea.vmem %s10, 50
      %v1468 = vld [vmem:[%s1467] ss:$8 sm:$0x3]
      %v1470 = vlaneseq
      %v1471 = vshrl.u32 %v1470, 7
      %v1472 = vsub.s32 0, %v1471
      %v1473 = vrot.slane %v1468, %v1472
      %v1474 = vlaneseq
      %v1475 = vshrl.u32 %v1474, 7
      %v1476 = vsub.s32 1, %v1475
      %v1477 = vrot.slane %v1468, %v1476
      %1478 = vrot.lane.b32.xlu0 %v1473, 73
      %v1479 = vpop.permute.xlu0 %1478
      %1480 = vrot.lane.b32.xlu0 %v1477, 73
      %v1481 = vpop.permute.xlu0 %1480
      %v1482 = vsel %vm540, %v1479, %v1481
      %v1486 = vmul.f32 %v507, %v1479
      %v1487 = vmul.f32 %v508, %v1482
      %v1488 = vmul.f32 %v507, %v1481
      %1492 = vrot.lane.b32.xlu0 %v1486, 55
      %v1493 = vpop.permute.xlu0 %1492
      %1494 = vrot.lane.b32.xlu0 %v1487, 55
      %v1495 = vpop.permute.xlu0 %1494
      %1496 = vrot.lane.b32.xlu0 %v1488, 55
      %v1497 = vpop.permute.xlu0 %1496
      %v1498 = vsel %vm523, %v1493, %v1495
      %v1499 = vsel %vm523, %v1495, %v1497
      %1502 = vst [vmem:[#allocation2 + $0x1a0] sm:$0xff] %v1498
      %1503 = vst [vmem:[#allocation2 + $0x1a8] sm:$0xff] %v1499
      %v1504 = vld [vmem:[%s4] sm:$0xff]
      %v1505 = vld [vmem:[%s4 + $0x8] sm:$0xff]
      %v1506 = vld [vmem:[#allocation2] sm:$0xff]
      %v1507 = vld [vmem:[#allocation2 + $0x8] sm:$0xff]
      %v1508 = vld [vmem:[#allocation2 + $0x10] sm:$0xff]
      %v1509 = vld [vmem:[#allocation2 + $0x18] sm:$0xff]
      %v1510 = vld [vmem:[#allocation2 + $0x20] sm:$0xff]
      %v1511 = vld [vmem:[#allocation2 + $0x28] sm:$0xff]
      %v1512 = vld [vmem:[#allocation2 + $0x30] sm:$0xff]
      %v1513 = vld [vmem:[#allocation2 + $0x38] sm:$0xff]
      %v1514 = vld [vmem:[#allocation2 + $0x40] sm:$0xff]
      %v1515 = vld [vmem:[#allocation2 + $0x48] sm:$0xff]
      %v1516 = vld [vmem:[#allocation2 + $0x50] sm:$0xff]
      %v1517 = vld [vmem:[#allocation2 + $0x58] sm:$0xff]
      %v1518 = vld [vmem:[#allocation2 + $0x60] sm:$0xff]
      %v1519 = vld [vmem:[#allocation2 + $0x68] sm:$0xff]
      %v1520 = vld [vmem:[#allocation2 + $0x70] sm:$0xff]
      %v1521 = vld [vmem:[#allocation2 + $0x78] sm:$0xff]
      %v1522 = vld [vmem:[#allocation2 + $0x80] sm:$0xff]
      %v1523 = vld [vmem:[#allocation2 + $0x88] sm:$0xff]
      %v1524 = vld [vmem:[#allocation2 + $0x90] sm:$0xff]
      %v1525 = vld [vmem:[#allocation2 + $0x98] sm:$0xff]
      %v1526 = vld [vmem:[#allocation2 + $0xa0] sm:$0xff]
      %v1527 = vld [vmem:[#allocation2 + $0xa8] sm:$0xff]
      %v1528 = vld [vmem:[#allocation2 + $0xb0] sm:$0xff]
      %v1529 = vld [vmem:[#allocation2 + $0xb8] sm:$0xff]
      %v1530 = vld [vmem:[#allocation2 + $0xc0] sm:$0xff]
      %v1531 = vld [vmem:[#allocation2 + $0xc8] sm:$0xff]
      %v1532 = vld [vmem:[#allocation2 + $0xd0] sm:$0xff]
      %v1533 = vld [vmem:[#allocation2 + $0xd8] sm:$0xff]
      %v1534 = vld [vmem:[#allocation2 + $0xe0] sm:$0xff]
      %v1535 = vld [vmem:[#allocation2 + $0xe8] sm:$0xff]
      %v1536 = vld [vmem:[#allocation2 + $0xf0] sm:$0xff]
      %v1537 = vld [vmem:[#allocation2 + $0xf8] sm:$0xff]
      %v1538 = vld [vmem:[#allocation2 + $0x100] sm:$0xff]
      %v1539 = vld [vmem:[#allocation2 + $0x108] sm:$0xff]
      %v1540 = vld [vmem:[#allocation2 + $0x110] sm:$0xff]
      %v1541 = vld [vmem:[#allocation2 + $0x118] sm:$0xff]
      %v1542 = vld [vmem:[#allocation2 + $0x120] sm:$0xff]
      %v1543 = vld [vmem:[#allocation2 + $0x128] sm:$0xff]
      %v1544 = vld [vmem:[#allocation2 + $0x130] sm:$0xff]
      %v1545 = vld [vmem:[#allocation2 + $0x138] sm:$0xff]
      %v1546 = vld [vmem:[#allocation2 + $0x140] sm:$0xff]
      %v1547 = vld [vmem:[#allocation2 + $0x148] sm:$0xff]
      %v1548 = vld [vmem:[#allocation2 + $0x150] sm:$0xff]
      %v1549 = vld [vmem:[#allocation2 + $0x158] sm:$0xff]
      %v1550 = vld [vmem:[#allocation2 + $0x160] sm:$0xff]
      %v1551 = vld [vmem:[#allocation2 + $0x168] sm:$0xff]
      %v1552 = vld [vmem:[#allocation2 + $0x170] sm:$0xff]
      %v1553 = vld [vmem:[#allocation2 + $0x178] sm:$0xff]
      %v1554 = vld [vmem:[#allocation2 + $0x180] sm:$0xff]
      %v1555 = vld [vmem:[#allocation2 + $0x188] sm:$0xff]
      %v1556 = vld [vmem:[#allocation2 + $0x190] sm:$0xff]
      %v1557 = vld [vmem:[#allocation2 + $0x198] sm:$0xff]
      %v1558 = vld [vmem:[#allocation2 + $0x1a0] sm:$0xff]
      %v1559 = vld [vmem:[#allocation2 + $0x1a8] sm:$0xff]
      %vm1560 = vcmask 719872
      %v1562 = vsel %vm1560, %v1505, 0
      %1564 = vmatprep.subr.mxu0 %v1537
      %1565 = vmatpush1.msra.mxu0 %v1536
      %1566 = vmatprep.subr.mxu0 %v1535
      %1567 = vmatpush1.msra.mxu0 %v1534
      %1568 = vmatprep.subr.mxu0 %v1533
      %1569 = vmatpush1.msra.mxu0 %v1532
      %1570 = vmatprep.subr.mxu0 %v1531
      %1571 = vmatpush1.msra.mxu0 %v1530
      %1572 = vmatprep.subr.mxu0 %v1529
      %1573 = vmatpush1.msra.mxu0 %v1528
      %1574 = vmatprep.subr.mxu0 %v1527
      %1575 = vmatpush1.msra.mxu0 %v1526
      %1576 = vmatprep.subr.mxu0 %v1525
      %1577 = vmatpush1.msra.mxu0 %v1524
      %1578 = vmatprep.subr.mxu0 %v1523
      %1579 = vmatpush1.msra.mxu0 %v1522
      %1580 = vmatprep.subr.mxu0 %v1521
      %1581 = vmatpush1.msra.mxu0 %v1520
      %1582 = vmatprep.subr.mxu0 %v1519
      %1583 = vmatpush1.msra.mxu0 %v1518
      %1584 = vmatprep.subr.mxu0 %v1517
      %1585 = vmatpush1.msra.mxu0 %v1516
      %1586 = vmatprep.subr.mxu0 %v1515
      %1587 = vmatpush1.msra.mxu0 %v1514
      %1588 = vmatprep.subr.mxu0 %v1513
      %1589 = vmatpush1.msra.mxu0 %v1512
      %1590 = vmatprep.subr.mxu0 %v1511
      %1591 = vmatpush1.msra.mxu0 %v1510
      %1592 = vmatprep.subr.mxu0 %v1509
      %1593 = vmatpush1.msra.mxu0 %v1508
      %1594 = vmatprep.subr.mxu0 %v1507
      %1595 = vmatpush1.msra.mxu0 %v1506
      %1596 = vmatprep.subr.mxu0 0.0
      %1597 = vmatpush2.msra.mxu0 0.0
      %1598 = vmatprep.subr.mxu0 0.0
      %1599 = vmatpush2.msra.mxu0 0.0
      %1600 = vmatprep.subr.mxu0 0.0
      %1601 = vmatpush2.msra.mxu0 0.0
      %1602 = vmatprep.subr.mxu0 0.0
      %1603 = vmatpush2.msra.mxu0 0.0
      %1604 = vmatprep.subr.mxu0 0.0
      %1605 = vmatpush2.msra.mxu0 0.0
      %1606 = vmatprep.subr.mxu0 %v1559
      %1607 = vmatpush2.msra.mxu0 %v1558
      %1608 = vmatprep.subr.mxu0 %v1557
      %1609 = vmatpush2.msra.mxu0 %v1556
      %1610 = vmatprep.subr.mxu0 %v1555
      %1611 = vmatpush2.msra.mxu0 %v1554
      %1612 = vmatprep.subr.mxu0 %v1553
      %1613 = vmatpush2.msra.mxu0 %v1552
      %1614 = vmatprep.subr.mxu0 %v1551
      %1615 = vmatpush2.msra.mxu0 %v1550
      %1616 = vmatprep.subr.mxu0 %v1549
      %1617 = vmatpush2.msra.mxu0 %v1548
      %1618 = vmatprep.subr.mxu0 %v1547
      %1619 = vmatpush2.msra.mxu0 %v1546
      %1620 = vmatprep.subr.mxu0 %v1545
      %1621 = vmatpush2.msra.mxu0 %v1544
      %1622 = vmatprep.subr.mxu0 %v1543
      %1623 = vmatpush2.msra.mxu0 %v1542
      %1624 = vmatprep.subr.mxu0 %v1541
      %1625 = vmatpush2.msra.mxu0 %v1540
      %1626 = vmatprep.subr.mxu0 %v1539
      %1627 = vmatpush2.msra.mxu0 %v1538
      %1628 = vmatprep.mubr.f32.mxu0 %v1562
      %1629 = vmatmul.mubr.f32.gmra.mxu0 %v1504
      %v1630 = vpop.f32.mrf.mxu0
      %v1631 = vadd.f32 0.0, %v1630
      %v1632 = vpop.f32.mrf.mxu0
      %v1633 = vadd.f32 0.0, %v1632
      %1634 = vdwg.mxu0
      %v1635 = vld [vmem:[%s5] sm:$0xff]
      %1637 = vset.pattern.permute.xlu0 0
      %1638 = vperm.xlu0 %1637, %v1635
      %v1639 = vpop.permute.xlu0 %1638
      %v1641 = vmul.f32 %v1631, %v1639
      %v1642 = vmul.f32 %v1633, %v1639
      %v1643 = vld [vmem:[%s6] sm:$0xff]
      %1645 = vset.pattern.permute.xlu0 0
      %1646 = vperm.xlu0 %1645, %v1643
      %v1647 = vpop.permute.xlu0 %1646
      %v1649 = vadd.f32 %v1641, %v1647
      %v1650 = vadd.f32 %v1642, %v1647
      %v1651 = vmax.f32 %v1649, 0.0
      %v1652 = vmax.f32 %v1650, 0.0
      %v1653 = vld [vmem:[%s7] sm:$0xff]
      %v1654 = vld [vmem:[%s7 + $0x8] sm:$0xff]
      %v1655 = vld [vmem:[%s7 + $0x10] sm:$0xff]
      %v1656 = vld [vmem:[%s7 + $0x18] sm:$0xff]
      %v1657 = vld [vmem:[%s7 + $0x20] sm:$0xff]
      %v1658 = vld [vmem:[%s7 + $0x28] sm:$0xff]
      %v1659 = vld [vmem:[%s7 + $0x30] sm:$0xff]
      %v1660 = vld [vmem:[%s7 + $0x38] sm:$0xff]
      %v1661 = vld [vmem:[%s7 + $0x40] sm:$0xff]
      %v1662 = vld [vmem:[%s7 + $0x48] sm:$0xff]
      %v1663 = vld [vmem:[%s7 + $0x50] sm:$0xff]
      %v1664 = vld [vmem:[%s7 + $0x58] sm:$0xff]
      %v1665 = vld [vmem:[%s7 + $0x60] sm:$0xff]
      %v1666 = vld [vmem:[%s7 + $0x68] sm:$0xff]
      %v1667 = vld [vmem:[%s7 + $0x70] sm:$0xff]
      %v1668 = vld [vmem:[%s7 + $0x78] sm:$0xff]
      %v1670 = vsel %vm921, %v1653, 0
      %v1673 = vsel %vm921, %v1654, 0
      %v1676 = vsel %vm921, %v1655, 0
      %v1679 = vsel %vm921, %v1656, 0
      %v1682 = vsel %vm921, %v1657, 0
      %v1685 = vsel %vm921, %v1658, 0
      %v1688 = vsel %vm921, %v1659, 0
      %v1691 = vsel %vm921, %v1660, 0
      %v1694 = vsel %vm921, %v1661, 0
      %v1697 = vsel %vm921, %v1662, 0
      %v1700 = vsel %vm921, %v1663, 0
      %v1703 = vsel %vm921, %v1664, 0
      %v1706 = vsel %vm921, %v1665, 0
      %v1709 = vsel %vm921, %v1666, 0
      %v1712 = vsel %vm921, %v1667, 0
      %v1715 = vsel %vm921, %v1668, 0
      %1717 = vmatprep.subr.mxu0 0.0
      %1718 = vmatpush1.msra.mxu0 0.0
      %1719 = vmatprep.subr.mxu0 0.0
      %1720 = vmatpush1.msra.mxu0 0.0
      %1721 = vmatprep.subr.mxu0 0.0
      %1722 = vmatpush1.msra.mxu0 0.0
      %1723 = vmatprep.subr.mxu0 0.0
      %1724 = vmatpush1.msra.mxu0 0.0
      %1725 = vmatprep.subr.mxu0 0.0
      %1726 = vmatpush1.msra.mxu0 0.0
      %1727 = vmatprep.subr.mxu0 0.0
      %1728 = vmatpush1.msra.mxu0 0.0
      %1729 = vmatprep.subr.mxu0 0.0
      %1730 = vmatpush1.msra.mxu0 0.0
      %1731 = vmatprep.subr.mxu0 0.0
      %1732 = vmatpush1.msra.mxu0 0.0
      %1733 = vmatprep.subr.mxu0 0.0
      %1734 = vmatpush1.msra.mxu0 0.0
      %1735 = vmatprep.subr.mxu0 0.0
      %1736 = vmatpush1.msra.mxu0 0.0
      %1737 = vmatprep.subr.mxu0 0.0
      %1738 = vmatpush1.msra.mxu0 0.0
      %1739 = vmatprep.subr.mxu0 0.0
      %1740 = vmatpush1.msra.mxu0 0.0
      %1741 = vmatprep.subr.mxu0 0.0
      %1742 = vmatpush1.msra.mxu0 0.0
      %1743 = vmatprep.subr.mxu0 0.0
      %1744 = vmatpush1.msra.mxu0 0.0
      %1745 = vmatprep.subr.mxu0 0.0
      %1746 = vmatpush1.msra.mxu0 0.0
      %1747 = vmatprep.subr.mxu0 %v1652
      %1748 = vmatpush1.msra.mxu0 %v1651
      %1749 = vmatprep.subr.mxu0 0.0
      %1750 = vmatpush2.msra.mxu0 0.0
      %1751 = vmatprep.subr.mxu0 0.0
      %1752 = vmatpush2.msra.mxu0 0.0
      %1753 = vmatprep.subr.mxu0 0.0
      %1754 = vmatpush2.msra.mxu0 0.0
      %1755 = vmatprep.subr.mxu0 0.0
      %1756 = vmatpush2.msra.mxu0 0.0
      %1757 = vmatprep.subr.mxu0 0.0
      %1758 = vmatpush2.msra.mxu0 0.0
      %1759 = vmatprep.subr.mxu0 0.0
      %1760 = vmatpush2.msra.mxu0 0.0
      %1761 = vmatprep.subr.mxu0 0.0
      %1762 = vmatpush2.msra.mxu0 0.0
      %1763 = vmatprep.subr.mxu0 0.0
      %1764 = vmatpush2.msra.mxu0 0.0
      %1765 = vmatprep.subr.mxu0 0.0
      %1766 = vmatpush2.msra.mxu0 0.0
      %1767 = vmatprep.subr.mxu0 0.0
      %1768 = vmatpush2.msra.mxu0 0.0
      %1769 = vmatprep.subr.mxu0 0.0
      %1770 = vmatpush2.msra.mxu0 0.0
      %1771 = vmatprep.subr.mxu0 0.0
      %1772 = vmatpush2.msra.mxu0 0.0
      %1773 = vmatprep.subr.mxu0 0.0
      %1774 = vmatpush2.msra.mxu0 0.0
      %1775 = vmatprep.subr.mxu0 0.0
      %1776 = vmatpush2.msra.mxu0 0.0
      %1777 = vmatprep.subr.mxu0 0.0
      %1778 = vmatpush2.msra.mxu0 0.0
      %1779 = vmatprep.subr.mxu0 0.0
      %1780 = vmatpush2.msra.mxu0 0.0
      %1781 = vmatprep.mubr.f32.mxu0 0.0
      %1782 = vmatmul.mubr.f32.gmra.mxu0 %v1670
      %v1783 = vpop.f32.mrf.mxu0
      %v1784 = vadd.f32 0.0, %v1783
      %v1785 = vpop.f32.mrf.mxu0
      %v1786 = vadd.f32 0.0, %v1785
      %1787 = vmatprep.mubr.f32.mxu0 0.0
      %1788 = vmatmul.mubr.f32.gmra.mxu0 %v1673
      %v1789 = vpop.f32.mrf.mxu0
      %v1790 = vadd.f32 0.0, %v1789
      %v1791 = vpop.f32.mrf.mxu0
      %v1792 = vadd.f32 0.0, %v1791
      %1793 = vmatprep.mubr.f32.mxu0 0.0
      %1794 = vmatmul.mubr.f32.gmra.mxu0 %v1676
      %v1795 = vpop.f32.mrf.mxu0
      %v1796 = vadd.f32 0.0, %v1795
      %v1797 = vpop.f32.mrf.mxu0
      %v1798 = vadd.f32 0.0, %v1797
      %1799 = vmatprep.mubr.f32.mxu0 0.0
      %1800 = vmatmul.mubr.f32.gmra.mxu0 %v1679
      %v1801 = vpop.f32.mrf.mxu0
      %v1802 = vadd.f32 0.0, %v1801
      %v1803 = vpop.f32.mrf.mxu0
      %v1804 = vadd.f32 0.0, %v1803
      %1805 = vmatprep.mubr.f32.mxu0 0.0
      %1806 = vmatmul.mubr.f32.gmra.mxu0 %v1682
      %v1807 = vpop.f32.mrf.mxu0
      %v1808 = vadd.f32 0.0, %v1807
      %v1809 = vpop.f32.mrf.mxu0
      %v1810 = vadd.f32 0.0, %v1809
      %1811 = vmatprep.mubr.f32.mxu0 0.0
      %1812 = vmatmul.mubr.f32.gmra.mxu0 %v1685
      %v1813 = vpop.f32.mrf.mxu0
      %v1814 = vadd.f32 0.0, %v1813
      %v1815 = vpop.f32.mrf.mxu0
      %v1816 = vadd.f32 0.0, %v1815
      %1817 = vmatprep.mubr.f32.mxu0 0.0
      %1818 = vmatmul.mubr.f32.gmra.mxu0 %v1688
      %v1819 = vpop.f32.mrf.mxu0
      %v1820 = vadd.f32 0.0, %v1819
      %v1821 = vpop.f32.mrf.mxu0
      %v1822 = vadd.f32 0.0, %v1821
      %1823 = vmatprep.mubr.f32.mxu0 0.0
      %1824 = vmatmul.mubr.f32.gmra.mxu0 %v1691
      %v1825 = vpop.f32.mrf.mxu0
      %v1826 = vadd.f32 0.0, %v1825
      %v1827 = vpop.f32.mrf.mxu0
      %v1828 = vadd.f32 0.0, %v1827
      %1829 = vmatprep.mubr.f32.mxu0 0.0
      %1830 = vmatmul.mubr.f32.gmra.mxu0 %v1694
      %v1831 = vpop.f32.mrf.mxu0
      %v1832 = vadd.f32 0.0, %v1831
      %v1833 = vpop.f32.mrf.mxu0
      %v1834 = vadd.f32 0.0, %v1833
      %1835 = vmatprep.mubr.f32.mxu0 0.0
      %1836 = vmatmul.mubr.f32.gmra.mxu0 %v1697
      %v1837 = vpop.f32.mrf.mxu0
      %v1838 = vadd.f32 0.0, %v1837
      %v1839 = vpop.f32.mrf.mxu0
      %v1840 = vadd.f32 0.0, %v1839
      %1841 = vmatprep.mubr.f32.mxu0 0.0
      %1842 = vmatmul.mubr.f32.gmra.mxu0 %v1700
      %v1843 = vpop.f32.mrf.mxu0
      %v1844 = vadd.f32 0.0, %v1843
      %v1845 = vpop.f32.mrf.mxu0
      %v1846 = vadd.f32 0.0, %v1845
      %1847 = vmatprep.mubr.f32.mxu0 0.0
      %1848 = vmatmul.mubr.f32.gmra.mxu0 %v1703
      %v1849 = vpop.f32.mrf.mxu0
      %v1850 = vadd.f32 0.0, %v1849
      %v1851 = vpop.f32.mrf.mxu0
      %v1852 = vadd.f32 0.0, %v1851
      %1853 = vmatprep.mubr.f32.mxu0 0.0
      %1854 = vmatmul.mubr.f32.gmra.mxu0 %v1706
      %v1855 = vpop.f32.mrf.mxu0
      %v1856 = vadd.f32 0.0, %v1855
      %v1857 = vpop.f32.mrf.mxu0
      %v1858 = vadd.f32 0.0, %v1857
      %1859 = vmatprep.mubr.f32.mxu0 0.0
      %1860 = vmatmul.mubr.f32.gmra.mxu0 %v1709
      %v1861 = vpop.f32.mrf.mxu0
      %v1862 = vadd.f32 0.0, %v1861
      %v1863 = vpop.f32.mrf.mxu0
      %v1864 = vadd.f32 0.0, %v1863
      %1865 = vmatprep.mubr.f32.mxu0 0.0
      %1866 = vmatmul.mubr.f32.gmra.mxu0 %v1712
      %v1867 = vpop.f32.mrf.mxu0
      %v1868 = vadd.f32 0.0, %v1867
      %v1869 = vpop.f32.mrf.mxu0
      %v1870 = vadd.f32 0.0, %v1869
      %1871 = vmatprep.mubr.f32.mxu0 0.0
      %1872 = vmatmul.mubr.f32.gmra.mxu0 %v1715
      %v1873 = vpop.f32.mrf.mxu0
      %v1874 = vadd.f32 0.0, %v1873
      %v1875 = vpop.f32.mrf.mxu0
      %v1876 = vadd.f32 0.0, %v1875
      %1877 = vdwg.mxu0
      %v1878 = vld [vmem:[%s8] sm:$0xff]
      %v1879 = vld [vmem:[%s8 + $0x8] sm:$0xff]
      %v1880 = vld [vmem:[%s8 + $0x10] sm:$0xff]
      %v1881 = vld [vmem:[%s8 + $0x18] sm:$0xff]
      %v1882 = vld [vmem:[%s8 + $0x20] sm:$0xff]
      %v1883 = vld [vmem:[%s8 + $0x28] sm:$0xff]
      %v1884 = vld [vmem:[%s8 + $0x30] sm:$0xff]
      %v1885 = vld [vmem:[%s8 + $0x38] sm:$0xff]
      %v1886 = vld [vmem:[%s8 + $0x40] sm:$0xff]
      %v1887 = vld [vmem:[%s8 + $0x48] sm:$0xff]
      %v1888 = vld [vmem:[%s8 + $0x50] sm:$0xff]
      %v1889 = vld [vmem:[%s8 + $0x58] sm:$0xff]
      %v1890 = vld [vmem:[%s8 + $0x60] sm:$0xff]
      %v1891 = vld [vmem:[%s8 + $0x68] sm:$0xff]
      %v1892 = vld [vmem:[%s8 + $0x70] sm:$0xff]
      %v1893 = vld [vmem:[%s8 + $0x78] sm:$0xff]
      %1895 = vset.pattern.permute.xlu0 0
      %1896 = vperm.xlu0 %1895, %v1878
      %v1897 = vpop.permute.xlu0 %1896
      %1900 = vset.pattern.permute.xlu0 0
      %1901 = vperm.xlu0 %1900, %v1879
      %v1902 = vpop.permute.xlu0 %1901
      %1905 = vset.pattern.permute.xlu0 0
      %1906 = vperm.xlu0 %1905, %v1880
      %v1907 = vpop.permute.xlu0 %1906
      %1910 = vset.pattern.permute.xlu0 0
      %1911 = vperm.xlu0 %1910, %v1881
      %v1912 = vpop.permute.xlu0 %1911
      %1915 = vset.pattern.permute.xlu0 0
      %1916 = vperm.xlu0 %1915, %v1882
      %v1917 = vpop.permute.xlu0 %1916
      %1920 = vset.pattern.permute.xlu0 0
      %1921 = vperm.xlu0 %1920, %v1883
      %v1922 = vpop.permute.xlu0 %1921
      %1925 = vset.pattern.permute.xlu0 0
      %1926 = vperm.xlu0 %1925, %v1884
      %v1927 = vpop.permute.xlu0 %1926
      %1930 = vset.pattern.permute.xlu0 0
      %1931 = vperm.xlu0 %1930, %v1885
      %v1932 = vpop.permute.xlu0 %1931
      %1935 = vset.pattern.permute.xlu0 0
      %1936 = vperm.xlu0 %1935, %v1886
      %v1937 = vpop.permute.xlu0 %1936
      %1940 = vset.pattern.permute.xlu0 0
      %1941 = vperm.xlu0 %1940, %v1887
      %v1942 = vpop.permute.xlu0 %1941
      %1945 = vset.pattern.permute.xlu0 0
      %1946 = vperm.xlu0 %1945, %v1888
      %v1947 = vpop.permute.xlu0 %1946
      %1950 = vset.pattern.permute.xlu0 0
      %1951 = vperm.xlu0 %1950, %v1889
      %v1952 = vpop.permute.xlu0 %1951
      %1955 = vset.pattern.permute.xlu0 0
      %1956 = vperm.xlu0 %1955, %v1890
      %v1957 = vpop.permute.xlu0 %1956
      %1960 = vset.pattern.permute.xlu0 0
      %1961 = vperm.xlu0 %1960, %v1891
      %v1962 = vpop.permute.xlu0 %1961
      %1965 = vset.pattern.permute.xlu0 0
      %1966 = vperm.xlu0 %1965, %v1892
      %v1967 = vpop.permute.xlu0 %1966
      %1970 = vset.pattern.permute.xlu0 0
      %1971 = vperm.xlu0 %1970, %v1893
      %v1972 = vpop.permute.xlu0 %1971
      %v1974 = vmul.f32 %v1784, %v1897
      %v1975 = vmul.f32 %v1786, %v1897
      %v1976 = vmul.f32 %v1790, %v1902
      %v1977 = vmul.f32 %v1792, %v1902
      %v1978 = vmul.f32 %v1796, %v1907
      %v1979 = vmul.f32 %v1798, %v1907
      %v1980 = vmul.f32 %v1802, %v1912
      %v1981 = vmul.f32 %v1804, %v1912
      %v1982 = vmul.f32 %v1808, %v1917
      %v1983 = vmul.f32 %v1810, %v1917
      %v1984 = vmul.f32 %v1814, %v1922
      %v1985 = vmul.f32 %v1816, %v1922
      %v1986 = vmul.f32 %v1820, %v1927
      %v1987 = vmul.f32 %v1822, %v1927
      %v1988 = vmul.f32 %v1826, %v1932
      %v1989 = vmul.f32 %v1828, %v1932
      %v1990 = vmul.f32 %v1832, %v1937
      %v1991 = vmul.f32 %v1834, %v1937
      %v1992 = vmul.f32 %v1838, %v1942
      %v1993 = vmul.f32 %v1840, %v1942
      %v1994 = vmul.f32 %v1844, %v1947
      %v1995 = vmul.f32 %v1846, %v1947
      %v1996 = vmul.f32 %v1850, %v1952
      %v1997 = vmul.f32 %v1852, %v1952
      %v1998 = vmul.f32 %v1856, %v1957
      %v1999 = vmul.f32 %v1858, %v1957
      %v2000 = vmul.f32 %v1862, %v1962
      %v2001 = vmul.f32 %v1864, %v1962
      %v2002 = vmul.f32 %v1868, %v1967
      %v2003 = vmul.f32 %v1870, %v1967
      %v2004 = vmul.f32 %v1874, %v1972
      %v2005 = vmul.f32 %v1876, %v1972
      %v2006 = vld [vmem:[%s9] sm:$0xff]
      %v2007 = vld [vmem:[%s9 + $0x8] sm:$0xff]
      %v2008 = vld [vmem:[%s9 + $0x10] sm:$0xff]
      %v2009 = vld [vmem:[%s9 + $0x18] sm:$0xff]
      %v2010 = vld [vmem:[%s9 + $0x20] sm:$0xff]
      %v2011 = vld [vmem:[%s9 + $0x28] sm:$0xff]
      %v2012 = vld [vmem:[%s9 + $0x30] sm:$0xff]
      %v2013 = vld [vmem:[%s9 + $0x38] sm:$0xff]
      %v2014 = vld [vmem:[%s9 + $0x40] sm:$0xff]
      %v2015 = vld [vmem:[%s9 + $0x48] sm:$0xff]
      %v2016 = vld [vmem:[%s9 + $0x50] sm:$0xff]
      %v2017 = vld [vmem:[%s9 + $0x58] sm:$0xff]
      %v2018 = vld [vmem:[%s9 + $0x60] sm:$0xff]
      %v2019 = vld [vmem:[%s9 + $0x68] sm:$0xff]
      %v2020 = vld [vmem:[%s9 + $0x70] sm:$0xff]
      %v2021 = vld [vmem:[%s9 + $0x78] sm:$0xff]
      %2023 = vset.pattern.permute.xlu0 0
      %2024 = vperm.xlu0 %2023, %v2006
      %v2025 = vpop.permute.xlu0 %2024
      %2028 = vset.pattern.permute.xlu0 0
      %2029 = vperm.xlu0 %2028, %v2007
      %v2030 = vpop.permute.xlu0 %2029
      %2033 = vset.pattern.permute.xlu0 0
      %2034 = vperm.xlu0 %2033, %v2008
      %v2035 = vpop.permute.xlu0 %2034
      %2038 = vset.pattern.permute.xlu0 0
      %2039 = vperm.xlu0 %2038, %v2009
      %v2040 = vpop.permute.xlu0 %2039
      %2043 = vset.pattern.permute.xlu0 0
      %2044 = vperm.xlu0 %2043, %v2010
      %v2045 = vpop.permute.xlu0 %2044
      %2048 = vset.pattern.permute.xlu0 0
      %2049 = vperm.xlu0 %2048, %v2011
      %v2050 = vpop.permute.xlu0 %2049
      %2053 = vset.pattern.permute.xlu0 0
      %2054 = vperm.xlu0 %2053, %v2012
      %v2055 = vpop.permute.xlu0 %2054
      %2058 = vset.pattern.permute.xlu0 0
      %2059 = vperm.xlu0 %2058, %v2013
      %v2060 = vpop.permute.xlu0 %2059
      %2063 = vset.pattern.permute.xlu0 0
      %2064 = vperm.xlu0 %2063, %v2014
      %v2065 = vpop.permute.xlu0 %2064
      %2068 = vset.pattern.permute.xlu0 0
      %2069 = vperm.xlu0 %2068, %v2015
      %v2070 = vpop.permute.xlu0 %2069
      %2073 = vset.pattern.permute.xlu0 0
      %2074 = vperm.xlu0 %2073, %v2016
      %v2075 = vpop.permute.xlu0 %2074
      %2078 = vset.pattern.permute.xlu0 0
      %2079 = vperm.xlu0 %2078, %v2017
      %v2080 = vpop.permute.xlu0 %2079
      %2083 = vset.pattern.permute.xlu0 0
      %2084 = vperm.xlu0 %2083, %v2018
      %v2085 = vpop.permute.xlu0 %2084
      %2088 = vset.pattern.permute.xlu0 0
      %2089 = vperm.xlu0 %2088, %v2019
      %v2090 = vpop.permute.xlu0 %2089
      %2093 = vset.pattern.permute.xlu0 0
      %2094 = vperm.xlu0 %2093, %v2020
      %v2095 = vpop.permute.xlu0 %2094
      %2098 = vset.pattern.permute.xlu0 0
      %2099 = vperm.xlu0 %2098, %v2021
      %v2100 = vpop.permute.xlu0 %2099
      %v2102 = vadd.f32 %v1974, %v2025
      %v2103 = vadd.f32 %v1975, %v2025
      %v2104 = vadd.f32 %v1976, %v2030
      %v2105 = vadd.f32 %v1977, %v2030
      %v2106 = vadd.f32 %v1978, %v2035
      %v2107 = vadd.f32 %v1979, %v2035
      %v2108 = vadd.f32 %v1980, %v2040
      %v2109 = vadd.f32 %v1981, %v2040
      %v2110 = vadd.f32 %v1982, %v2045
      %v2111 = vadd.f32 %v1983, %v2045
      %v2112 = vadd.f32 %v1984, %v2050
      %v2113 = vadd.f32 %v1985, %v2050
      %v2114 = vadd.f32 %v1986, %v2055
      %v2115 = vadd.f32 %v1987, %v2055
      %v2116 = vadd.f32 %v1988, %v2060
      %v2117 = vadd.f32 %v1989, %v2060
      %v2118 = vadd.f32 %v1990, %v2065
      %v2119 = vadd.f32 %v1991, %v2065
      %v2120 = vadd.f32 %v1992, %v2070
      %v2121 = vadd.f32 %v1993, %v2070
      %v2122 = vadd.f32 %v1994, %v2075
      %v2123 = vadd.f32 %v1995, %v2075
      %v2124 = vadd.f32 %v1996, %v2080
      %v2125 = vadd.f32 %v1997, %v2080
      %v2126 = vadd.f32 %v1998, %v2085
      %v2127 = vadd.f32 %v1999, %v2085
      %v2128 = vadd.f32 %v2000, %v2090
      %v2129 = vadd.f32 %v2001, %v2090
      %v2130 = vadd.f32 %v2002, %v2095
      %v2131 = vadd.f32 %v2003, %v2095
      %v2132 = vadd.f32 %v2004, %v2100
      %v2133 = vadd.f32 %v2005, %v2100
      %v2134 = vadd.f32 %v2102, %v387
      %v2135 = vadd.f32 %v2103, %v388
      %v2136 = vadd.f32 %v2104, %v389
      %v2137 = vadd.f32 %v2105, %v390
      %v2138 = vadd.f32 %v2106, %v391
      %v2139 = vadd.f32 %v2107, %v392
      %v2140 = vadd.f32 %v2108, %v393
      %v2141 = vadd.f32 %v2109, %v394
      %v2142 = vadd.f32 %v2110, %v395
      %v2143 = vadd.f32 %v2111, %v396
      %v2144 = vadd.f32 %v2112, %v397
      %v2145 = vadd.f32 %v2113, %v398
      %v2146 = vadd.f32 %v2114, %v399
      %v2147 = vadd.f32 %v2115, %v400
      %v2148 = vadd.f32 %v2116, %v401
      %v2149 = vadd.f32 %v2117, %v402
      %v2150 = vadd.f32 %v2118, %v403
      %v2151 = vadd.f32 %v2119, %v404
      %v2152 = vadd.f32 %v2120, %v405
      %v2153 = vadd.f32 %v2121, %v406
      %v2154 = vadd.f32 %v2122, %v407
      %v2155 = vadd.f32 %v2123, %v408
      %v2156 = vadd.f32 %v2124, %v409
      %v2157 = vadd.f32 %v2125, %v410
      %v2158 = vadd.f32 %v2126, %v411
      %v2159 = vadd.f32 %v2127, %v412
      %v2160 = vadd.f32 %v2128, %v413
      %v2161 = vadd.f32 %v2129, %v414
      %v2162 = vadd.f32 %v2130, %v415
      %v2163 = vadd.f32 %v2131, %v416
      %v2164 = vadd.f32 %v2132, %v417
      %v2165 = vadd.f32 %v2133, %v418
      %v2166 = vmax.f32 %v2134, 0.0
      %v2167 = vmax.f32 %v2135, 0.0
      %v2168 = vmax.f32 %v2136, 0.0
      %v2169 = vmax.f32 %v2137, 0.0
      %v2170 = vmax.f32 %v2138, 0.0
      %v2171 = vmax.f32 %v2139, 0.0
      %v2172 = vmax.f32 %v2140, 0.0
      %v2173 = vmax.f32 %v2141, 0.0
      %v2174 = vmax.f32 %v2142, 0.0
      %v2175 = vmax.f32 %v2143, 0.0
      %v2176 = vmax.f32 %v2144, 0.0
      %v2177 = vmax.f32 %v2145, 0.0
      %v2178 = vmax.f32 %v2146, 0.0
      %v2179 = vmax.f32 %v2147, 0.0
      %v2180 = vmax.f32 %v2148, 0.0
      %v2181 = vmax.f32 %v2149, 0.0
      %v2182 = vmax.f32 %v2150, 0.0
      %v2183 = vmax.f32 %v2151, 0.0
      %v2184 = vmax.f32 %v2152, 0.0
      %v2185 = vmax.f32 %v2153, 0.0
      %v2186 = vmax.f32 %v2154, 0.0
      %v2187 = vmax.f32 %v2155, 0.0
      %v2188 = vmax.f32 %v2156, 0.0
      %v2189 = vmax.f32 %v2157, 0.0
      %v2190 = vmax.f32 %v2158, 0.0
      %v2191 = vmax.f32 %v2159, 0.0
      %v2192 = vmax.f32 %v2160, 0.0
      %v2193 = vmax.f32 %v2161, 0.0
      %v2194 = vmax.f32 %v2162, 0.0
      %v2195 = vmax.f32 %v2163, 0.0
      %v2196 = vmax.f32 %v2164, 0.0
      %v2197 = vmax.f32 %v2165, 0.0
      %2198 = vst [vmem:[%s386] sm:$0xff] %v2166
      %2199 = vst [vmem:[%s386 + $0x8] sm:$0xff] %v2167
      %2200 = vst [vmem:[%s386 + $0x10] sm:$0xff] %v2168
      %2201 = vst [vmem:[%s386 + $0x18] sm:$0xff] %v2169
      %2202 = vst [vmem:[%s386 + $0x20] sm:$0xff] %v2170
      %2203 = vst [vmem:[%s386 + $0x28] sm:$0xff] %v2171
      %2204 = vst [vmem:[%s386 + $0x30] sm:$0xff] %v2172
      %2205 = vst [vmem:[%s386 + $0x38] sm:$0xff] %v2173
      %2206 = vst [vmem:[%s386 + $0x40] sm:$0xff] %v2174
      %2207 = vst [vmem:[%s386 + $0x48] sm:$0xff] %v2175
      %2208 = vst [vmem:[%s386 + $0x50] sm:$0xff] %v2176
      %2209 = vst [vmem:[%s386 + $0x58] sm:$0xff] %v2177
      %2210 = vst [vmem:[%s386 + $0x60] sm:$0xff] %v2178
      %2211 = vst [vmem:[%s386 + $0x68] sm:$0xff] %v2179
      %2212 = vst [vmem:[%s386 + $0x70] sm:$0xff] %v2180
      %2213 = vst [vmem:[%s386 + $0x78] sm:$0xff] %v2181
      %2214 = vst [vmem:[%s386 + $0x80] sm:$0xff] %v2182
      %2215 = vst [vmem:[%s386 + $0x88] sm:$0xff] %v2183
      %2216 = vst [vmem:[%s386 + $0x90] sm:$0xff] %v2184
      %2217 = vst [vmem:[%s386 + $0x98] sm:$0xff] %v2185
      %2218 = vst [vmem:[%s386 + $0xa0] sm:$0xff] %v2186
      %2219 = vst [vmem:[%s386 + $0xa8] sm:$0xff] %v2187
      %2220 = vst [vmem:[%s386 + $0xb0] sm:$0xff] %v2188
      %2221 = vst [vmem:[%s386 + $0xb8] sm:$0xff] %v2189
      %2222 = vst [vmem:[%s386 + $0xc0] sm:$0xff] %v2190
      %2223 = vst [vmem:[%s386 + $0xc8] sm:$0xff] %v2191
      %2224 = vst [vmem:[%s386 + $0xd0] sm:$0xff] %v2192
      %2225 = vst [vmem:[%s386 + $0xd8] sm:$0xff] %v2193
      %2226 = vst [vmem:[%s386 + $0xe0] sm:$0xff] %v2194
      %2227 = vst [vmem:[%s386 + $0xe8] sm:$0xff] %v2195
      %2228 = vst [vmem:[%s386 + $0xf0] sm:$0xff] %v2196
      %2229 = vst [vmem:[%s386 + $0xf8] sm:$0xff] %v2197
      %p2230 = scmp.lt.s32.totalorder %s22, 1
      %s2231 = scalar_select %p2230, %s22, 1
      %s2232 = smul.addr %s2231, 32
      %s2233 = smul.addr %s2232, 8
      %s2234 = scalar_lea.vmem %s11, %s2233
      // Predicated region
      $region65: #{resnext_bottleneck_forward.1} parent=63 // pred_check
        %p2235 = pneg %p276
      $region66: #{resnext_bottleneck_forward.1} parent=63 // pred_check_branch
        %2237 = sbr.rel (%p2235) target = $region68
      $region67: #{resnext_bottleneck_forward.1} parent=63 // pred_region
        _
      $region68: #{resnext_bottleneck_forward.1} parent=63 // pred_fallthru
        _
    $region64: #{resnext_bottleneck_forward.1} parent=5 // pred_fallthru
      _
    %p2238 = scmp.le.s32.totalorder 2, %s17
    // Predicated region
    $region69: #{resnext_bottleneck_forward.1} parent=5 // pred_check
      %p2239 = pneg %p2238
    $region70: #{resnext_bottleneck_forward.1} parent=5 // pred_check_branch
      %2241 = sbr.rel (%p2239) target = $region72
    $region71: #{resnext_bottleneck_forward.1} parent=5 // pred_region
      %s2242 = ssub.s32 %s17, 2
      // Predicated region
      $region73: #{resnext_bottleneck_forward.1} parent=71 // pred_check
        %p2243 = pneg %p282
      $region74: #{resnext_bottleneck_forward.1} parent=71 // pred_check_branch
        %2245 = sbr.rel (%p2243) target = $region76
      $region75: #{resnext_bottleneck_forward.1} parent=71 // pred_region
        %p2246 = scmp.lt.s32.totalorder %s23, 1
        %s2247 = scalar_select %p2246, %s23, 1
        %s2248 = smul.addr %s2247, 32
        %s2249 = smul.addr %s2248, 8
        %s2250 = scalar_lea.vmem %s11, %s2249
      $region76: #{resnext_bottleneck_forward.1} parent=71 // pred_fallthru
        _
    $region72: #{resnext_bottleneck_forward.1} parent=5 // pred_fallthru
      _
  $region6: #{resnext_bottleneck_forward.1} parent=0 // loop_footer
    %s21 = sadd.s32 1, %s17
  $region7: #{resnext_bottleneck_forward.1} parent=0 // loop_footer_branch
    %16 = sbr.rel target = $region3
  $region8: #{resnext_bottleneck_forward.1} parent=0 // loop_exit
    _

</llo_original>
